<compile_context>
chip_gen: v7x
topology: tpu7x:2x2x1
jax: 0.10.0
libtpu: 0.0.40
codegen_flags: <defaults>
</compile_context>

<pallas_src>
import math
import functools

import jax
import jax.numpy as jnp
from jax import lax
from jax.experimental import pallas as pl
from jax.experimental.pallas import tpu as pltpu

# ----------------------------- config (small) -------------------------------
VOCAB = 128
BLOCK_SIZE = 8      # T
N_LAYER = 2
N_HEAD = 2
N_EMBD = 32         # C
HEAD_DIM = N_EMBD // N_HEAD
BATCH = 2
LN_EPS = 1e-5


def _layernorm(x, w_row, b_row):
    # x: (M, C); w_row/b_row: (1, C)
    mu = jnp.mean(x, axis=-1, keepdims=True)
    var = jnp.mean((x - mu) * (x - mu), axis=-1, keepdims=True)
    return (x - mu) * lax.rsqrt(var + LN_EPS) * w_row + b_row


def _new_gelu(x):
    return 0.5 * x * (1.0 + jnp.tanh(
        math.sqrt(2.0 / math.pi) * (x + 0.044715 * x * x * x)))


# ----------------------------- fused kernel ---------------------------------
def fused_forward_kernel(x_ref,                      # (B*T, C)
                         mask_ref,                   # (B*nh*T, B*nh*T) additive bias
                         ln1w_ref, ln1b_ref,         # (L, 1, C)
                         wqkv_ref, bqkv_ref,         # (L, C, 3C), (L, 1, 3C)
                         wproj_ref, bproj_ref,       # (L, C, C),  (L, 1, C)
                         ln2w_ref, ln2b_ref,         # (L, 1, C)
                         wfc_ref, bfc_ref,           # (L, C, 4C), (L, 1, 4C)
                         wfp_ref, bfp_ref,           # (L, 4C, C), (L, 1, C)
                         lnfw_ref, lnfb_ref,         # (1, C)
                         wlm_ref,                    # (C, V)
                         o_ref,                      # (B*T, V)
                         *, n_layer, n_head, batch, seq):
    BT, C = x_ref.shape
    hd = C // n_head

    x = x_ref[...]                                   # (BT, C), resident in vregs/VMEM
    mask_bias = mask_ref[...]                        # (nh*B*T, nh*B*T): 0 / -1e30

    for l in range(n_layer):                         # static unroll (L = 2)
        # ---------------- attention branch ----------------
        h1 = _layernorm(x, ln1w_ref[l], ln1b_ref[l])                 # (BT, C)

        # one fused QKV matmul (Q columns pre-scaled by 1/sqrt(hd) in the wrapper)
        qkv = jnp.dot(h1, wqkv_ref[l],
                      preferred_element_type=jnp.float32) + bqkv_ref[l]   # (BT, 3C)

        # head-major stacking to (nh*B*T, hd): lane slice (multiples of hd) +
        # sublane concat -- no 4-D transposes.
        def heads(base):
            return jnp.concatenate(
                [qkv[:, base + h * hd: base + (h + 1) * hd] for h in range(n_head)],
                axis=0)

        qh = heads(0)          # (nh*BT, hd)
        kh = heads(C)
        vh = heads(2 * C)

        # single fused score matmul over all (batch, head) blocks
        s = jnp.einsum('qd,kd->qk', qh, kh,
                       preferred_element_type=jnp.float32) + mask_bias   # (nh*BT, nh*BT)
        s = s - jnp.max(s, axis=-1, keepdims=True)
        p = jnp.exp(s)
        p = p / jnp.sum(p, axis=-1, keepdims=True)    # exact divide (correctness)

        y = jnp.dot(p, vh, preferred_element_type=jnp.float32)          # (nh*BT, hd)

        # lane-concat the per-head outputs back to (BT, C), single packed projection
        y = jnp.concatenate([y[h * BT:(h + 1) * BT, :] for h in range(n_head)],
                            axis=1)                                       # (BT, C)
        x = x + jnp.dot(y, wproj_ref[l],
                        preferred_element_type=jnp.float32) + bproj_ref[l]

        # ---------------- MLP branch ----------------
        h2 = _layernorm(x, ln2w_ref[l], ln2b_ref[l])
        f = jnp.dot(h2, wfc_ref[l],
                    preferred_element_type=jnp.float32) + bfc_ref[l]      # (BT, 4C)
        f = _new_gelu(f)
        x = x + jnp.dot(f, wfp_ref[l],
                        preferred_element_type=jnp.float32) + bfp_ref[l]

    # ---------------- final LN + lm_head (lane-dense 128-wide HBM store) ----------------
    hf = _layernorm(x, lnfw_ref[...], lnfb_ref[...])
    o_ref[...] = jnp.dot(hf, wlm_ref[...], preferred_element_type=jnp.float32)  # (BT, V)


# ----------------------------- wrapper ---------------------------------------
def _stack_block_params(blocks):
    """Stack per-layer weights, keeping the packed (lane-dense) layouts."""
    C = N_EMBD
    scale = 1.0 / math.sqrt(HEAD_DIM)
    # fold 1/sqrt(hd) into the Q columns of the packed QKV weight/bias
    qkv_scale = jnp.concatenate([jnp.full((C,), scale, jnp.float32),
                                 jnp.ones((2 * C,), jnp.float32)])[None, :]   # (1, 3C)

    def per_layer(p):
        return dict(
            ln1_w=p["ln1_w"].reshape(1, C), ln1_b=p["ln1_b"].reshape(1, C),
            w_qkv=p["w_qkv"] * qkv_scale,
            b_qkv=p["b_qkv"].reshape(1, 3 * C) * qkv_scale,
            w_proj=p["w_proj"], b_proj=p["b_proj"].reshape(1, C),
            ln2_w=p["ln2_w"].reshape(1, C), ln2_b=p["ln2_b"].reshape(1, C),
            w_fc=p["w_fc"], b_fc=p["b_fc"].reshape(1, 4 * C),
            w_fp=p["w_fcproj"], b_fp=p["b_fcproj"].reshape(1, C),
        )

    per = [per_layer(p) for p in blocks]
    return {k: jnp.stack([p[k] for p in per], axis=0) for k in per[0]}


def _attn_mask_bias(batch, n_head, seq):
    """Additive 0/-1e30 mask: block-diagonal over (head, batch) AND causal within."""
    gt = batch * n_head * seq
    r = jnp.arange(gt, dtype=jnp.int32)
    row, col = r[:, None], r[None, :]
    visible = (row // seq == col // seq) & (row % seq >= col % seq)
    return jnp.where(visible, 0.0, -1e30).astype(jnp.float32)


@jax.jit
def transformer_forward(idx, params):
    """idx: (B, T) int32 -> logits (B, T, VOCAB). targets=None path (loss=None)."""
    B, T = idx.shape
    assert T <= BLOCK_SIZE
    C, V = N_EMBD, VOCAB

    # embedding gather + positional add stays in JAX (glue)
    tok_emb = jnp.take(params["wte"], idx, axis=0)          # (B, T, C)
    pos_emb = params["wpe"][:T][None, :, :]                 # (1, T, C)
    x_flat = (tok_emb + pos_emb).reshape(B * T, C)

    s = _stack_block_params(params["blocks"])
    mask_bias = _attn_mask_bias(B, N_HEAD, T)
    lnf_w = params["lnf_w"].reshape(1, C)
    lnf_b = params["lnf_b"].reshape(1, C)
    w_lm = params["w_lm_t"]                                 # (C, V)

    kernel = functools.partial(fused_forward_kernel, n_layer=N_LAYER,
                               n_head=N_HEAD, batch=B, seq=T)
    operands = (x_flat, mask_bias,
                s["ln1_w"], s["ln1_b"],
                s["w_qkv"], s["b_qkv"],
                s["w_proj"], s["b_proj"],
                s["ln2_w"], s["ln2_b"],
                s["w_fc"], s["b_fc"],
                s["w_fp"], s["b_fp"],
                lnf_w, lnf_b, w_lm)

    logits_flat = pl.pallas_call(
        kernel,
        out_shape=jax.ShapeDtypeStruct((B * T, V), jnp.float32),
        in_specs=[pl.BlockSpec(memory_space=pltpu.MemorySpace.VMEM)] * len(operands),
        out_specs=pl.BlockSpec(memory_space=pltpu.MemorySpace.VMEM),
        compiler_params=pltpu.CompilerParams(vmem_limit_bytes=8 * 1024 * 1024),
    )(*operands)

    return logits_flat.reshape(B, T, V)


# ----------------------------- param init -----------------------------------
def init_params(key):
    C, V, T4 = N_EMBD, VOCAB, 4 * N_EMBD
    keys = jax.random.split(key, 3 + N_LAYER)

    def w(k, shape, scale=0.02):
        return (scale * jax.random.normal(k, shape)).astype(jnp.float32)

    params = {
        "wte": w(keys[0], (V, C)),
        "wpe": w(keys[1], (BLOCK_SIZE, C)),
        "lnf_w": jnp.ones((1, C), jnp.float32),
        "lnf_b": jnp.zeros((1, C), jnp.float32),
        "w_lm_t": w(keys[2], (C, V)),        # lm_head.weight.T  (no bias)
        "blocks": [],
    }
    for l in range(N_LAYER):
        ks = jax.random.split(keys[3 + l], 4)
        params["blocks"].append({
            "ln1_w": jnp.ones((1, C), jnp.float32),
            "ln1_b": jnp.zeros((1, C), jnp.float32),
            "w_qkv": w(ks[0], (C, 3 * C)),
            "b_qkv": jnp.zeros((1, 3 * C), jnp.float32),
            "w_proj": w(ks[1], (C, C)),
            "b_proj": jnp.zeros((1, C), jnp.float32),
            "ln2_w": jnp.ones((1, C), jnp.float32),
            "ln2_b": jnp.zeros((1, C), jnp.float32),
            "w_fc": w(ks[2], (C, T4)),
            "b_fc": jnp.zeros((1, T4), jnp.float32),
            "w_fcproj": w(ks[3], (T4, C)),
            "b_fcproj": jnp.zeros((1, C), jnp.float32),
        })
    return params


# ----------------------------- pure-JAX reference ----------------------------
def reference_forward(idx, params):
    B, T = idx.shape
    C, nh, hd = N_EMBD, N_HEAD, HEAD_DIM
    x = jnp.take(params["wte"], idx, axis=0) + params["wpe"][:T][None]

    def ln(v, w, b):
        mu = jnp.mean(v, axis=-1, keepdims=True)
        var = jnp.mean((v - mu) ** 2, axis=-1, keepdims=True)
        return (v - mu) / jnp.sqrt(var + LN_EPS) * w[0] + b[0]

    mask = jnp.tril(jnp.ones((T, T), bool))
    for p in params["blocks"]:
        h1 = ln(x, p["ln1_w"], p["ln1_b"])
        qkv = h1 @ p["w_qkv"] + p["b_qkv"][0]
        q, k, v = jnp.split(qkv, 3, axis=-1)
        q = q.reshape(B, T, nh, hd).transpose(0, 2, 1, 3)
        k = k.reshape(B, T, nh, hd).transpose(0, 2, 1, 3)
        v = v.reshape(B, T, nh, hd).transpose(0, 2, 1, 3)
        att = (q @ jnp.swapaxes(k, -1, -2)) / math.sqrt(hd)
        att = jnp.where(mask, att, -jnp.inf)
        att = jax.nn.softmax(att, axis=-1)
        y = (att @ v).transpose(0, 2, 1, 3).reshape(B, T, C)
        x = x + y @ p["w_proj"] + p["b_proj"][0]
        h2 = ln(x, p["ln2_w"], p["ln2_b"])
        f = h2 @ p["w_fc"] + p["b_fc"][0]
        f = 0.5 * f * (1.0 + jnp.tanh(math.sqrt(2.0 / math.pi) * (f + 0.044715 * f ** 3)))
        x = x + f @ p["w_fcproj"] + p["b_fcproj"][0]
    x = ln(x, params["lnf_w"], params["lnf_b"])
    return x @ params["w_lm_t"]


# ----------------------------------- main ------------------------------------
if __name__ == "__main__":
    key = jax.random.PRNGKey(0)
    pkey, ikey = jax.random.split(key)
    params = init_params(pkey)

    idx = jax.random.randint(ikey, (BATCH, BLOCK_SIZE), 0, VOCAB, dtype=jnp.int32)

    logits = transformer_forward(idx, params)
    logits = jax.block_until_ready(logits)

    ref = jax.block_until_ready(reference_forward(idx, params))
    assert logits.shape == (BATCH, BLOCK_SIZE, VOCAB)
    # exact softmax divide now; remaining tolerance covers default-precision TPU matmul
    # handling plus the reordered 1/sqrt(hd) fold into the packed QKV weight.
    assert jnp.allclose(logits, ref, atol=1e-3, rtol=1e-3)

    # TODO(synk): training-time loss path (log_softmax + score-scaled nll_loss with
    # ignore_index=-1) is not implemented; forward returns logits only (targets=None).
    print("KERNEL_OK")
</pallas_src>

<mosaic_0001>
module attributes {stable_mosaic.version = 11 : i64} {
  func.func @fused_forward_kernel(%arg0: memref<16x32xf32, #tpu.memory_space<vmem>>, %arg1: memref<32x32xf32, #tpu.memory_space<vmem>>, %arg2: memref<2x1x32xf32, #tpu.memory_space<vmem>>, %arg3: memref<2x1x32xf32, #tpu.memory_space<vmem>>, %arg4: memref<2x32x96xf32, #tpu.memory_space<vmem>>, %arg5: memref<2x1x96xf32, #tpu.memory_space<vmem>>, %arg6: memref<2x32x32xf32, #tpu.memory_space<vmem>>, %arg7: memref<2x1x32xf32, #tpu.memory_space<vmem>>, %arg8: memref<2x1x32xf32, #tpu.memory_space<vmem>>, %arg9: memref<2x1x32xf32, #tpu.memory_space<vmem>>, %arg10: memref<2x32x128xf32, #tpu.memory_space<vmem>>, %arg11: memref<2x1x128xf32, #tpu.memory_space<vmem>>, %arg12: memref<2x128x32xf32, #tpu.memory_space<vmem>>, %arg13: memref<2x1x32xf32, #tpu.memory_space<vmem>>, %arg14: memref<1x32xf32, #tpu.memory_space<vmem>>, %arg15: memref<1x32xf32, #tpu.memory_space<vmem>>, %arg16: memref<32x128xf32, #tpu.memory_space<vmem>>, %arg17: memref<16x128xf32, #tpu.memory_space<vmem>>) attributes {dimension_semantics = [], scalar_prefetch = 0 : i64, scratch_operands = 0 : i64, tpu.core_type = #tpu.core_type<tc>} {
    %c0 = arith.constant 0 : index
    %c0_0 = arith.constant 0 : index
    %0 = vector.load %arg0[%c0, %c0_0] : memref<16x32xf32, #tpu.memory_space<vmem>>, vector<16x32xf32>
    %c0_1 = arith.constant 0 : index
    %c0_2 = arith.constant 0 : index
    %1 = vector.load %arg1[%c0_1, %c0_2] : memref<32x32xf32, #tpu.memory_space<vmem>>, vector<32x32xf32>
    %c0_3 = arith.constant 0 : index
    %c0_4 = arith.constant 0 : index
    %c0_5 = arith.constant 0 : index
    %2 = vector.load %arg2[%c0_3, %c0_4, %c0_5] : memref<2x1x32xf32, #tpu.memory_space<vmem>>, vector<1x1x32xf32>
    %3 = vector.shape_cast %2 : vector<1x1x32xf32> to vector<1x32xf32>
    %c0_6 = arith.constant 0 : index
    %c0_7 = arith.constant 0 : index
    %c0_8 = arith.constant 0 : index
    %4 = vector.load %arg3[%c0_6, %c0_7, %c0_8] : memref<2x1x32xf32, #tpu.memory_space<vmem>>, vector<1x1x32xf32>
    %5 = vector.shape_cast %4 : vector<1x1x32xf32> to vector<1x32xf32>
    %cst = arith.constant dense<0.000000e+00> : vector<16xf32>
    %6 = vector.multi_reduction <add>, %0, %cst [1] : vector<16x32xf32> to vector<16xf32>
    %7 = vector.shape_cast %6 : vector<16xf32> to vector<16x1xf32>
    %cst_9 = arith.constant 3.200000e+01 : f32
    %8 = vector.broadcast %cst_9 : f32 to vector<16x1xf32>
    %9 = arith.divf %7, %8 : vector<16x1xf32>
    %10 = vector.broadcast %9 : vector<16x1xf32> to vector<16x32xf32>
    %11 = arith.subf %0, %10 : vector<16x32xf32>
    %12 = vector.broadcast %9 : vector<16x1xf32> to vector<16x32xf32>
    %13 = arith.subf %0, %12 : vector<16x32xf32>
    %14 = arith.mulf %11, %13 : vector<16x32xf32>
    %cst_10 = arith.constant dense<0.000000e+00> : vector<16xf32>
    %15 = vector.multi_reduction <add>, %14, %cst_10 [1] : vector<16x32xf32> to vector<16xf32>
    %16 = vector.shape_cast %15 : vector<16xf32> to vector<16x1xf32>
    %cst_11 = arith.constant 3.200000e+01 : f32
    %17 = vector.broadcast %cst_11 : f32 to vector<16x1xf32>
    %18 = arith.divf %16, %17 : vector<16x1xf32>
    %19 = vector.broadcast %9 : vector<16x1xf32> to vector<16x32xf32>
    %20 = arith.subf %0, %19 : vector<16x32xf32>
    %cst_12 = arith.constant 9.99999974E-6 : f32
    %21 = vector.broadcast %cst_12 : f32 to vector<16x1xf32>
    %22 = arith.addf %18, %21 : vector<16x1xf32>
    %23 = math.rsqrt %22 : vector<16x1xf32>
    %24 = vector.broadcast %23 : vector<16x1xf32> to vector<16x32xf32>
    %25 = arith.mulf %20, %24 : vector<16x32xf32>
    %26 = vector.broadcast %3 : vector<1x32xf32> to vector<16x32xf32>
    %27 = arith.mulf %25, %26 : vector<16x32xf32>
    %28 = vector.broadcast %5 : vector<1x32xf32> to vector<16x32xf32>
    %29 = arith.addf %27, %28 : vector<16x32xf32>
    %c0_13 = arith.constant 0 : index
    %c0_14 = arith.constant 0 : index
    %c0_15 = arith.constant 0 : index
    %30 = vector.load %arg4[%c0_13, %c0_14, %c0_15] : memref<2x32x96xf32, #tpu.memory_space<vmem>>, vector<1x32x96xf32>
    %31 = vector.shape_cast %30 : vector<1x32x96xf32> to vector<32x96xf32>
    %cst_16 = arith.constant dense<0.000000e+00> : vector<16x96xf32>
    %32 = tpu.matmul %29, %31, %cst_16 {dimension_numbers = #tpu.dot_dimension_numbers<[1], [0], [0], [1], [0, 0, 1, 1], [], []>} : vector<16x32xf32>, vector<32x96xf32>, vector<16x96xf32> -> vector<16x96xf32>
    %c0_17 = arith.constant 0 : index
    %c0_18 = arith.constant 0 : index
    %c0_19 = arith.constant 0 : index
    %33 = vector.load %arg5[%c0_17, %c0_18, %c0_19] : memref<2x1x96xf32, #tpu.memory_space<vmem>>, vector<1x1x96xf32>
    %34 = vector.shape_cast %33 : vector<1x1x96xf32> to vector<1x96xf32>
    %35 = vector.broadcast %34 : vector<1x96xf32> to vector<16x96xf32>
    %36 = arith.addf %32, %35 : vector<16x96xf32>
    %37 = vector.extract_strided_slice %36 {offsets = [0, 0], sizes = [16, 16], strides = [1, 1]} : vector<16x96xf32> to vector<16x16xf32>
    %38 = vector.extract_strided_slice %36 {offsets = [0, 16], sizes = [16, 16], strides = [1, 1]} : vector<16x96xf32> to vector<16x16xf32>
    %39 = tpu.concatenate %37, %38 in 0 : vector<16x16xf32>, vector<16x16xf32> -> vector<32x16xf32>
    %40 = vector.extract_strided_slice %36 {offsets = [0, 32], sizes = [16, 16], strides = [1, 1]} : vector<16x96xf32> to vector<16x16xf32>
    %41 = vector.extract_strided_slice %36 {offsets = [0, 48], sizes = [16, 16], strides = [1, 1]} : vector<16x96xf32> to vector<16x16xf32>
    %42 = tpu.concatenate %40, %41 in 0 : vector<16x16xf32>, vector<16x16xf32> -> vector<32x16xf32>
    %43 = vector.extract_strided_slice %36 {offsets = [0, 64], sizes = [16, 16], strides = [1, 1]} : vector<16x96xf32> to vector<16x16xf32>
    %44 = vector.extract_strided_slice %36 {offsets = [0, 80], sizes = [16, 16], strides = [1, 1]} : vector<16x96xf32> to vector<16x16xf32>
    %45 = tpu.concatenate %43, %44 in 0 : vector<16x16xf32>, vector<16x16xf32> -> vector<32x16xf32>
    "tpu.trace_start"() <{level = 10 : i32, message = "qd,kd->qk"}> : () -> ()
    %cst_20 = arith.constant dense<0.000000e+00> : vector<32x32xf32>
    %46 = tpu.matmul %39, %42, %cst_20 {dimension_numbers = #tpu.dot_dimension_numbers<[1], [1], [0], [0], [0, 0, 1, 0], [], []>} : vector<32x16xf32>, vector<32x16xf32>, vector<32x32xf32> -> vector<32x32xf32>
    "tpu.trace_stop"() : () -> ()
    %47 = arith.addf %46, %1 : vector<32x32xf32>
    %cst_21 = arith.constant dense<0xFF800000> : vector<32xf32>
    %48 = vector.multi_reduction <maximumf>, %47, %cst_21 [1] : vector<32x32xf32> to vector<32xf32>
    %49 = vector.shape_cast %48 : vector<32xf32> to vector<32x1xf32>
    %50 = vector.broadcast %49 : vector<32x1xf32> to vector<32x32xf32>
    %51 = arith.subf %47, %50 : vector<32x32xf32>
    %52 = math.exp %51 : vector<32x32xf32>
    %cst_22 = arith.constant dense<0.000000e+00> : vector<32xf32>
    %53 = vector.multi_reduction <add>, %52, %cst_22 [1] : vector<32x32xf32> to vector<32xf32>
    %54 = vector.shape_cast %53 : vector<32xf32> to vector<32x1xf32>
    %55 = vector.broadcast %54 : vector<32x1xf32> to vector<32x32xf32>
    %56 = arith.divf %52, %55 : vector<32x32xf32>
    %cst_23 = arith.constant dense<0.000000e+00> : vector<32x16xf32>
    %57 = tpu.matmul %56, %45, %cst_23 {dimension_numbers = #tpu.dot_dimension_numbers<[1], [0], [0], [1], [0, 0, 1, 1], [], []>} : vector<32x32xf32>, vector<32x16xf32>, vector<32x16xf32> -> vector<32x16xf32>
    %58 = vector.extract_strided_slice %57 {offsets = [0, 0], sizes = [16, 16], strides = [1, 1]} : vector<32x16xf32> to vector<16x16xf32>
    %59 = vector.extract_strided_slice %57 {offsets = [16, 0], sizes = [16, 16], strides = [1, 1]} : vector<32x16xf32> to vector<16x16xf32>
    %60 = tpu.concatenate %58, %59 in 1 : vector<16x16xf32>, vector<16x16xf32> -> vector<16x32xf32>
    %c0_24 = arith.constant 0 : index
    %c0_25 = arith.constant 0 : index
    %c0_26 = arith.constant 0 : index
    %61 = vector.load %arg6[%c0_24, %c0_25, %c0_26] : memref<2x32x32xf32, #tpu.memory_space<vmem>>, vector<1x32x32xf32>
    %62 = vector.shape_cast %61 : vector<1x32x32xf32> to vector<32x32xf32>
    %cst_27 = arith.constant dense<0.000000e+00> : vector<16x32xf32>
    %63 = tpu.matmul %60, %62, %cst_27 {dimension_numbers = #tpu.dot_dimension_numbers<[1], [0], [0], [1], [0, 0, 1, 1], [], []>} : vector<16x32xf32>, vector<32x32xf32>, vector<16x32xf32> -> vector<16x32xf32>
    %64 = arith.addf %0, %63 : vector<16x32xf32>
    %c0_28 = arith.constant 0 : index
    %c0_29 = arith.constant 0 : index
    %c0_30 = arith.constant 0 : index
    %65 = vector.load %arg7[%c0_28, %c0_29, %c0_30] : memref<2x1x32xf32, #tpu.memory_space<vmem>>, vector<1x1x32xf32>
    %66 = vector.shape_cast %65 : vector<1x1x32xf32> to vector<1x32xf32>
    %67 = vector.broadcast %66 : vector<1x32xf32> to vector<16x32xf32>
    %68 = arith.addf %64, %67 : vector<16x32xf32>
    %c0_31 = arith.constant 0 : index
    %c0_32 = arith.constant 0 : index
    %c0_33 = arith.constant 0 : index
    %69 = vector.load %arg8[%c0_31, %c0_32, %c0_33] : memref<2x1x32xf32, #tpu.memory_space<vmem>>, vector<1x1x32xf32>
    %70 = vector.shape_cast %69 : vector<1x1x32xf32> to vector<1x32xf32>
    %c0_34 = arith.constant 0 : index
    %c0_35 = arith.constant 0 : index
    %c0_36 = arith.constant 0 : index
    %71 = vector.load %arg9[%c0_34, %c0_35, %c0_36] : memref<2x1x32xf32, #tpu.memory_space<vmem>>, vector<1x1x32xf32>
    %72 = vector.shape_cast %71 : vector<1x1x32xf32> to vector<1x32xf32>
    %cst_37 = arith.constant dense<0.000000e+00> : vector<16xf32>
    %73 = vector.multi_reduction <add>, %68, %cst_37 [1] : vector<16x32xf32> to vector<16xf32>
    %74 = vector.shape_cast %73 : vector<16xf32> to vector<16x1xf32>
    %cst_38 = arith.constant 3.200000e+01 : f32
    %75 = vector.broadcast %cst_38 : f32 to vector<16x1xf32>
    %76 = arith.divf %74, %75 : vector<16x1xf32>
    %77 = vector.broadcast %76 : vector<16x1xf32> to vector<16x32xf32>
    %78 = arith.subf %68, %77 : vector<16x32xf32>
    %79 = vector.broadcast %76 : vector<16x1xf32> to vector<16x32xf32>
    %80 = arith.subf %68, %79 : vector<16x32xf32>
    %81 = arith.mulf %78, %80 : vector<16x32xf32>
    %cst_39 = arith.constant dense<0.000000e+00> : vector<16xf32>
    %82 = vector.multi_reduction <add>, %81, %cst_39 [1] : vector<16x32xf32> to vector<16xf32>
    %83 = vector.shape_cast %82 : vector<16xf32> to vector<16x1xf32>
    %cst_40 = arith.constant 3.200000e+01 : f32
    %84 = vector.broadcast %cst_40 : f32 to vector<16x1xf32>
    %85 = arith.divf %83, %84 : vector<16x1xf32>
    %86 = vector.broadcast %76 : vector<16x1xf32> to vector<16x32xf32>
    %87 = arith.subf %68, %86 : vector<16x32xf32>
    %cst_41 = arith.constant 9.99999974E-6 : f32
    %88 = vector.broadcast %cst_41 : f32 to vector<16x1xf32>
    %89 = arith.addf %85, %88 : vector<16x1xf32>
    %90 = math.rsqrt %89 : vector<16x1xf32>
    %91 = vector.broadcast %90 : vector<16x1xf32> to vector<16x32xf32>
    %92 = arith.mulf %87, %91 : vector<16x32xf32>
    %93 = vector.broadcast %70 : vector<1x32xf32> to vector<16x32xf32>
    %94 = arith.mulf %92, %93 : vector<16x32xf32>
    %95 = vector.broadcast %72 : vector<1x32xf32> to vector<16x32xf32>
    %96 = arith.addf %94, %95 : vector<16x32xf32>
    %c0_42 = arith.constant 0 : index
    %c0_43 = arith.constant 0 : index
    %c0_44 = arith.constant 0 : index
    %97 = vector.load %arg10[%c0_42, %c0_43, %c0_44] : memref<2x32x128xf32, #tpu.memory_space<vmem>>, vector<1x32x128xf32>
    %98 = vector.shape_cast %97 : vector<1x32x128xf32> to vector<32x128xf32>
    %cst_45 = arith.constant dense<0.000000e+00> : vector<16x128xf32>
    %99 = tpu.matmul %96, %98, %cst_45 {dimension_numbers = #tpu.dot_dimension_numbers<[1], [0], [0], [1], [0, 0, 1, 1], [], []>} : vector<16x32xf32>, vector<32x128xf32>, vector<16x128xf32> -> vector<16x128xf32>
    %c0_46 = arith.constant 0 : index
    %c0_47 = arith.constant 0 : index
    %c0_48 = arith.constant 0 : index
    %100 = vector.load %arg11[%c0_46, %c0_47, %c0_48] : memref<2x1x128xf32, #tpu.memory_space<vmem>>, vector<1x1x128xf32>
    %101 = vector.shape_cast %100 : vector<1x1x128xf32> to vector<1x128xf32>
    %102 = vector.broadcast %101 : vector<1x128xf32> to vector<16x128xf32>
    %103 = arith.addf %99, %102 : vector<16x128xf32>
    %cst_49 = arith.constant 5.000000e-01 : f32
    %104 = vector.broadcast %cst_49 : f32 to vector<16x128xf32>
    %105 = arith.mulf %104, %103 : vector<16x128xf32>
    %cst_50 = arith.constant 4.471500e-02 : f32
    %106 = vector.broadcast %cst_50 : f32 to vector<16x128xf32>
    %107 = arith.mulf %106, %103 : vector<16x128xf32>
    %108 = arith.mulf %107, %103 : vector<16x128xf32>
    %109 = arith.mulf %108, %103 : vector<16x128xf32>
    %110 = arith.addf %103, %109 : vector<16x128xf32>
    %cst_51 = arith.constant 0.797884583 : f32
    %111 = vector.broadcast %cst_51 : f32 to vector<16x128xf32>
    %112 = arith.mulf %111, %110 : vector<16x128xf32>
    %113 = math.tanh %112 : vector<16x128xf32>
    %cst_52 = arith.constant 1.000000e+00 : f32
    %114 = vector.broadcast %cst_52 : f32 to vector<16x128xf32>
    %115 = arith.addf %114, %113 : vector<16x128xf32>
    %116 = arith.mulf %105, %115 : vector<16x128xf32>
    %c0_53 = arith.constant 0 : index
    %c0_54 = arith.constant 0 : index
    %c0_55 = arith.constant 0 : index
    %117 = vector.load %arg12[%c0_53, %c0_54, %c0_55] : memref<2x128x32xf32, #tpu.memory_space<vmem>>, vector<1x128x32xf32>
    %118 = vector.shape_cast %117 : vector<1x128x32xf32> to vector<128x32xf32>
    %cst_56 = arith.constant dense<0.000000e+00> : vector<16x32xf32>
    %119 = tpu.matmul %116, %118, %cst_56 {dimension_numbers = #tpu.dot_dimension_numbers<[1], [0], [0], [1], [0, 0, 1, 1], [], []>} : vector<16x128xf32>, vector<128x32xf32>, vector<16x32xf32> -> vector<16x32xf32>
    %120 = arith.addf %68, %119 : vector<16x32xf32>
    %c0_57 = arith.constant 0 : index
    %c0_58 = arith.constant 0 : index
    %c0_59 = arith.constant 0 : index
    %121 = vector.load %arg13[%c0_57, %c0_58, %c0_59] : memref<2x1x32xf32, #tpu.memory_space<vmem>>, vector<1x1x32xf32>
    %122 = vector.shape_cast %121 : vector<1x1x32xf32> to vector<1x32xf32>
    %123 = vector.broadcast %122 : vector<1x32xf32> to vector<16x32xf32>
    %124 = arith.addf %120, %123 : vector<16x32xf32>
    %c1 = arith.constant 1 : index
    %c0_60 = arith.constant 0 : index
    %c0_61 = arith.constant 0 : index
    %125 = vector.load %arg2[%c1, %c0_60, %c0_61] : memref<2x1x32xf32, #tpu.memory_space<vmem>>, vector<1x1x32xf32>
    %126 = vector.shape_cast %125 : vector<1x1x32xf32> to vector<1x32xf32>
    %c1_62 = arith.constant 1 : index
    %c0_63 = arith.constant 0 : index
    %c0_64 = arith.constant 0 : index
    %127 = vector.load %arg3[%c1_62, %c0_63, %c0_64] : memref<2x1x32xf32, #tpu.memory_space<vmem>>, vector<1x1x32xf32>
    %128 = vector.shape_cast %127 : vector<1x1x32xf32> to vector<1x32xf32>
    %cst_65 = arith.constant dense<0.000000e+00> : vector<16xf32>
    %129 = vector.multi_reduction <add>, %124, %cst_65 [1] : vector<16x32xf32> to vector<16xf32>
    %130 = vector.shape_cast %129 : vector<16xf32> to vector<16x1xf32>
    %cst_66 = arith.constant 3.200000e+01 : f32
    %131 = vector.broadcast %cst_66 : f32 to vector<16x1xf32>
    %132 = arith.divf %130, %131 : vector<16x1xf32>
    %133 = vector.broadcast %132 : vector<16x1xf32> to vector<16x32xf32>
    %134 = arith.subf %124, %133 : vector<16x32xf32>
    %135 = vector.broadcast %132 : vector<16x1xf32> to vector<16x32xf32>
    %136 = arith.subf %124, %135 : vector<16x32xf32>
    %137 = arith.mulf %134, %136 : vector<16x32xf32>
    %cst_67 = arith.constant dense<0.000000e+00> : vector<16xf32>
    %138 = vector.multi_reduction <add>, %137, %cst_67 [1] : vector<16x32xf32> to vector<16xf32>
    %139 = vector.shape_cast %138 : vector<16xf32> to vector<16x1xf32>
    %cst_68 = arith.constant 3.200000e+01 : f32
    %140 = vector.broadcast %cst_68 : f32 to vector<16x1xf32>
    %141 = arith.divf %139, %140 : vector<16x1xf32>
    %142 = vector.broadcast %132 : vector<16x1xf32> to vector<16x32xf32>
    %143 = arith.subf %124, %142 : vector<16x32xf32>
    %cst_69 = arith.constant 9.99999974E-6 : f32
    %144 = vector.broadcast %cst_69 : f32 to vector<16x1xf32>
    %145 = arith.addf %141, %144 : vector<16x1xf32>
    %146 = math.rsqrt %145 : vector<16x1xf32>
    %147 = vector.broadcast %146 : vector<16x1xf32> to vector<16x32xf32>
    %148 = arith.mulf %143, %147 : vector<16x32xf32>
    %149 = vector.broadcast %126 : vector<1x32xf32> to vector<16x32xf32>
    %150 = arith.mulf %148, %149 : vector<16x32xf32>
    %151 = vector.broadcast %128 : vector<1x32xf32> to vector<16x32xf32>
    %152 = arith.addf %150, %151 : vector<16x32xf32>
    %c1_70 = arith.constant 1 : index
    %c0_71 = arith.constant 0 : index
    %c0_72 = arith.constant 0 : index
    %153 = vector.load %arg4[%c1_70, %c0_71, %c0_72] : memref<2x32x96xf32, #tpu.memory_space<vmem>>, vector<1x32x96xf32>
    %154 = vector.shape_cast %153 : vector<1x32x96xf32> to vector<32x96xf32>
    %cst_73 = arith.constant dense<0.000000e+00> : vector<16x96xf32>
    %155 = tpu.matmul %152, %154, %cst_73 {dimension_numbers = #tpu.dot_dimension_numbers<[1], [0], [0], [1], [0, 0, 1, 1], [], []>} : vector<16x32xf32>, vector<32x96xf32>, vector<16x96xf32> -> vector<16x96xf32>
    %c1_74 = arith.constant 1 : index
    %c0_75 = arith.constant 0 : index
    %c0_76 = arith.constant 0 : index
    %156 = vector.load %arg5[%c1_74, %c0_75, %c0_76] : memref<2x1x96xf32, #tpu.memory_space<vmem>>, vector<1x1x96xf32>
    %157 = vector.shape_cast %156 : vector<1x1x96xf32> to vector<1x96xf32>
    %158 = vector.broadcast %157 : vector<1x96xf32> to vector<16x96xf32>
    %159 = arith.addf %155, %158 : vector<16x96xf32>
    %160 = vector.extract_strided_slice %159 {offsets = [0, 0], sizes = [16, 16], strides = [1, 1]} : vector<16x96xf32> to vector<16x16xf32>
    %161 = vector.extract_strided_slice %159 {offsets = [0, 16], sizes = [16, 16], strides = [1, 1]} : vector<16x96xf32> to vector<16x16xf32>
    %162 = tpu.concatenate %160, %161 in 0 : vector<16x16xf32>, vector<16x16xf32> -> vector<32x16xf32>
    %163 = vector.extract_strided_slice %159 {offsets = [0, 32], sizes = [16, 16], strides = [1, 1]} : vector<16x96xf32> to vector<16x16xf32>
    %164 = vector.extract_strided_slice %159 {offsets = [0, 48], sizes = [16, 16], strides = [1, 1]} : vector<16x96xf32> to vector<16x16xf32>
    %165 = tpu.concatenate %163, %164 in 0 : vector<16x16xf32>, vector<16x16xf32> -> vector<32x16xf32>
    %166 = vector.extract_strided_slice %159 {offsets = [0, 64], sizes = [16, 16], strides = [1, 1]} : vector<16x96xf32> to vector<16x16xf32>
    %167 = vector.extract_strided_slice %159 {offsets = [0, 80], sizes = [16, 16], strides = [1, 1]} : vector<16x96xf32> to vector<16x16xf32>
    %168 = tpu.concatenate %166, %167 in 0 : vector<16x16xf32>, vector<16x16xf32> -> vector<32x16xf32>
    "tpu.trace_start"() <{level = 10 : i32, message = "qd,kd->qk"}> : () -> ()
    %cst_77 = arith.constant dense<0.000000e+00> : vector<32x32xf32>
    %169 = tpu.matmul %162, %165, %cst_77 {dimension_numbers = #tpu.dot_dimension_numbers<[1], [1], [0], [0], [0, 0, 1, 0], [], []>} : vector<32x16xf32>, vector<32x16xf32>, vector<32x32xf32> -> vector<32x32xf32>
    "tpu.trace_stop"() : () -> ()
    %170 = arith.addf %169, %1 : vector<32x32xf32>
    %cst_78 = arith.constant dense<0xFF800000> : vector<32xf32>
    %171 = vector.multi_reduction <maximumf>, %170, %cst_78 [1] : vector<32x32xf32> to vector<32xf32>
    %172 = vector.shape_cast %171 : vector<32xf32> to vector<32x1xf32>
    %173 = vector.broadcast %172 : vector<32x1xf32> to vector<32x32xf32>
    %174 = arith.subf %170, %173 : vector<32x32xf32>
    %175 = math.exp %174 : vector<32x32xf32>
    %cst_79 = arith.constant dense<0.000000e+00> : vector<32xf32>
    %176 = vector.multi_reduction <add>, %175, %cst_79 [1] : vector<32x32xf32> to vector<32xf32>
    %177 = vector.shape_cast %176 : vector<32xf32> to vector<32x1xf32>
    %178 = vector.broadcast %177 : vector<32x1xf32> to vector<32x32xf32>
    %179 = arith.divf %175, %178 : vector<32x32xf32>
    %cst_80 = arith.constant dense<0.000000e+00> : vector<32x16xf32>
    %180 = tpu.matmul %179, %168, %cst_80 {dimension_numbers = #tpu.dot_dimension_numbers<[1], [0], [0], [1], [0, 0, 1, 1], [], []>} : vector<32x32xf32>, vector<32x16xf32>, vector<32x16xf32> -> vector<32x16xf32>
    %181 = vector.extract_strided_slice %180 {offsets = [0, 0], sizes = [16, 16], strides = [1, 1]} : vector<32x16xf32> to vector<16x16xf32>
    %182 = vector.extract_strided_slice %180 {offsets = [16, 0], sizes = [16, 16], strides = [1, 1]} : vector<32x16xf32> to vector<16x16xf32>
    %183 = tpu.concatenate %181, %182 in 1 : vector<16x16xf32>, vector<16x16xf32> -> vector<16x32xf32>
    %c1_81 = arith.constant 1 : index
    %c0_82 = arith.constant 0 : index
    %c0_83 = arith.constant 0 : index
    %184 = vector.load %arg6[%c1_81, %c0_82, %c0_83] : memref<2x32x32xf32, #tpu.memory_space<vmem>>, vector<1x32x32xf32>
    %185 = vector.shape_cast %184 : vector<1x32x32xf32> to vector<32x32xf32>
    %cst_84 = arith.constant dense<0.000000e+00> : vector<16x32xf32>
    %186 = tpu.matmul %183, %185, %cst_84 {dimension_numbers = #tpu.dot_dimension_numbers<[1], [0], [0], [1], [0, 0, 1, 1], [], []>} : vector<16x32xf32>, vector<32x32xf32>, vector<16x32xf32> -> vector<16x32xf32>
    %187 = arith.addf %124, %186 : vector<16x32xf32>
    %c1_85 = arith.constant 1 : index
    %c0_86 = arith.constant 0 : index
    %c0_87 = arith.constant 0 : index
    %188 = vector.load %arg7[%c1_85, %c0_86, %c0_87] : memref<2x1x32xf32, #tpu.memory_space<vmem>>, vector<1x1x32xf32>
    %189 = vector.shape_cast %188 : vector<1x1x32xf32> to vector<1x32xf32>
    %190 = vector.broadcast %189 : vector<1x32xf32> to vector<16x32xf32>
    %191 = arith.addf %187, %190 : vector<16x32xf32>
    %c1_88 = arith.constant 1 : index
    %c0_89 = arith.constant 0 : index
    %c0_90 = arith.constant 0 : index
    %192 = vector.load %arg8[%c1_88, %c0_89, %c0_90] : memref<2x1x32xf32, #tpu.memory_space<vmem>>, vector<1x1x32xf32>
    %193 = vector.shape_cast %192 : vector<1x1x32xf32> to vector<1x32xf32>
    %c1_91 = arith.constant 1 : index
    %c0_92 = arith.constant 0 : index
    %c0_93 = arith.constant 0 : index
    %194 = vector.load %arg9[%c1_91, %c0_92, %c0_93] : memref<2x1x32xf32, #tpu.memory_space<vmem>>, vector<1x1x32xf32>
    %195 = vector.shape_cast %194 : vector<1x1x32xf32> to vector<1x32xf32>
    %cst_94 = arith.constant dense<0.000000e+00> : vector<16xf32>
    %196 = vector.multi_reduction <add>, %191, %cst_94 [1] : vector<16x32xf32> to vector<16xf32>
    %197 = vector.shape_cast %196 : vector<16xf32> to vector<16x1xf32>
    %cst_95 = arith.constant 3.200000e+01 : f32
    %198 = vector.broadcast %cst_95 : f32 to vector<16x1xf32>
    %199 = arith.divf %197, %198 : vector<16x1xf32>
    %200 = vector.broadcast %199 : vector<16x1xf32> to vector<16x32xf32>
    %201 = arith.subf %191, %200 : vector<16x32xf32>
    %202 = vector.broadcast %199 : vector<16x1xf32> to vector<16x32xf32>
    %203 = arith.subf %191, %202 : vector<16x32xf32>
    %204 = arith.mulf %201, %203 : vector<16x32xf32>
    %cst_96 = arith.constant dense<0.000000e+00> : vector<16xf32>
    %205 = vector.multi_reduction <add>, %204, %cst_96 [1] : vector<16x32xf32> to vector<16xf32>
    %206 = vector.shape_cast %205 : vector<16xf32> to vector<16x1xf32>
    %cst_97 = arith.constant 3.200000e+01 : f32
    %207 = vector.broadcast %cst_97 : f32 to vector<16x1xf32>
    %208 = arith.divf %206, %207 : vector<16x1xf32>
    %209 = vector.broadcast %199 : vector<16x1xf32> to vector<16x32xf32>
    %210 = arith.subf %191, %209 : vector<16x32xf32>
    %cst_98 = arith.constant 9.99999974E-6 : f32
    %211 = vector.broadcast %cst_98 : f32 to vector<16x1xf32>
    %212 = arith.addf %208, %211 : vector<16x1xf32>
    %213 = math.rsqrt %212 : vector<16x1xf32>
    %214 = vector.broadcast %213 : vector<16x1xf32> to vector<16x32xf32>
    %215 = arith.mulf %210, %214 : vector<16x32xf32>
    %216 = vector.broadcast %193 : vector<1x32xf32> to vector<16x32xf32>
    %217 = arith.mulf %215, %216 : vector<16x32xf32>
    %218 = vector.broadcast %195 : vector<1x32xf32> to vector<16x32xf32>
    %219 = arith.addf %217, %218 : vector<16x32xf32>
    %c1_99 = arith.constant 1 : index
    %c0_100 = arith.constant 0 : index
    %c0_101 = arith.constant 0 : index
    %220 = vector.load %arg10[%c1_99, %c0_100, %c0_101] : memref<2x32x128xf32, #tpu.memory_space<vmem>>, vector<1x32x128xf32>
    %221 = vector.shape_cast %220 : vector<1x32x128xf32> to vector<32x128xf32>
    %cst_102 = arith.constant dense<0.000000e+00> : vector<16x128xf32>
    %222 = tpu.matmul %219, %221, %cst_102 {dimension_numbers = #tpu.dot_dimension_numbers<[1], [0], [0], [1], [0, 0, 1, 1], [], []>} : vector<16x32xf32>, vector<32x128xf32>, vector<16x128xf32> -> vector<16x128xf32>
    %c1_103 = arith.constant 1 : index
    %c0_104 = arith.constant 0 : index
    %c0_105 = arith.constant 0 : index
    %223 = vector.load %arg11[%c1_103, %c0_104, %c0_105] : memref<2x1x128xf32, #tpu.memory_space<vmem>>, vector<1x1x128xf32>
    %224 = vector.shape_cast %223 : vector<1x1x128xf32> to vector<1x128xf32>
    %225 = vector.broadcast %224 : vector<1x128xf32> to vector<16x128xf32>
    %226 = arith.addf %222, %225 : vector<16x128xf32>
    %cst_106 = arith.constant 5.000000e-01 : f32
    %227 = vector.broadcast %cst_106 : f32 to vector<16x128xf32>
    %228 = arith.mulf %227, %226 : vector<16x128xf32>
    %cst_107 = arith.constant 4.471500e-02 : f32
    %229 = vector.broadcast %cst_107 : f32 to vector<16x128xf32>
    %230 = arith.mulf %229, %226 : vector<16x128xf32>
    %231 = arith.mulf %230, %226 : vector<16x128xf32>
    %232 = arith.mulf %231, %226 : vector<16x128xf32>
    %233 = arith.addf %226, %232 : vector<16x128xf32>
    %cst_108 = arith.constant 0.797884583 : f32
    %234 = vector.broadcast %cst_108 : f32 to vector<16x128xf32>
    %235 = arith.mulf %234, %233 : vector<16x128xf32>
    %236 = math.tanh %235 : vector<16x128xf32>
    %cst_109 = arith.constant 1.000000e+00 : f32
    %237 = vector.broadcast %cst_109 : f32 to vector<16x128xf32>
    %238 = arith.addf %237, %236 : vector<16x128xf32>
    %239 = arith.mulf %228, %238 : vector<16x128xf32>
    %c1_110 = arith.constant 1 : index
    %c0_111 = arith.constant 0 : index
    %c0_112 = arith.constant 0 : index
    %240 = vector.load %arg12[%c1_110, %c0_111, %c0_112] : memref<2x128x32xf32, #tpu.memory_space<vmem>>, vector<1x128x32xf32>
    %241 = vector.shape_cast %240 : vector<1x128x32xf32> to vector<128x32xf32>
    %cst_113 = arith.constant dense<0.000000e+00> : vector<16x32xf32>
    %242 = tpu.matmul %239, %241, %cst_113 {dimension_numbers = #tpu.dot_dimension_numbers<[1], [0], [0], [1], [0, 0, 1, 1], [], []>} : vector<16x128xf32>, vector<128x32xf32>, vector<16x32xf32> -> vector<16x32xf32>
    %243 = arith.addf %191, %242 : vector<16x32xf32>
    %c1_114 = arith.constant 1 : index
    %c0_115 = arith.constant 0 : index
    %c0_116 = arith.constant 0 : index
    %244 = vector.load %arg13[%c1_114, %c0_115, %c0_116] : memref<2x1x32xf32, #tpu.memory_space<vmem>>, vector<1x1x32xf32>
    %245 = vector.shape_cast %244 : vector<1x1x32xf32> to vector<1x32xf32>
    %246 = vector.broadcast %245 : vector<1x32xf32> to vector<16x32xf32>
    %247 = arith.addf %243, %246 : vector<16x32xf32>
    %c0_117 = arith.constant 0 : index
    %c0_118 = arith.constant 0 : index
    %248 = vector.load %arg14[%c0_117, %c0_118] : memref<1x32xf32, #tpu.memory_space<vmem>>, vector<1x32xf32>
    %c0_119 = arith.constant 0 : index
    %c0_120 = arith.constant 0 : index
    %249 = vector.load %arg15[%c0_119, %c0_120] : memref<1x32xf32, #tpu.memory_space<vmem>>, vector<1x32xf32>
    %cst_121 = arith.constant dense<0.000000e+00> : vector<16xf32>
    %250 = vector.multi_reduction <add>, %247, %cst_121 [1] : vector<16x32xf32> to vector<16xf32>
    %251 = vector.shape_cast %250 : vector<16xf32> to vector<16x1xf32>
    %cst_122 = arith.constant 3.200000e+01 : f32
    %252 = vector.broadcast %cst_122 : f32 to vector<16x1xf32>
    %253 = arith.divf %251, %252 : vector<16x1xf32>
    %254 = vector.broadcast %253 : vector<16x1xf32> to vector<16x32xf32>
    %255 = arith.subf %247, %254 : vector<16x32xf32>
    %256 = vector.broadcast %253 : vector<16x1xf32> to vector<16x32xf32>
    %257 = arith.subf %247, %256 : vector<16x32xf32>
    %258 = arith.mulf %255, %257 : vector<16x32xf32>
    %cst_123 = arith.constant dense<0.000000e+00> : vector<16xf32>
    %259 = vector.multi_reduction <add>, %258, %cst_123 [1] : vector<16x32xf32> to vector<16xf32>
    %260 = vector.shape_cast %259 : vector<16xf32> to vector<16x1xf32>
    %cst_124 = arith.constant 3.200000e+01 : f32
    %261 = vector.broadcast %cst_124 : f32 to vector<16x1xf32>
    %262 = arith.divf %260, %261 : vector<16x1xf32>
    %263 = vector.broadcast %253 : vector<16x1xf32> to vector<16x32xf32>
    %264 = arith.subf %247, %263 : vector<16x32xf32>
    %cst_125 = arith.constant 9.99999974E-6 : f32
    %265 = vector.broadcast %cst_125 : f32 to vector<16x1xf32>
    %266 = arith.addf %262, %265 : vector<16x1xf32>
    %267 = math.rsqrt %266 : vector<16x1xf32>
    %268 = vector.broadcast %267 : vector<16x1xf32> to vector<16x32xf32>
    %269 = arith.mulf %264, %268 : vector<16x32xf32>
    %270 = vector.broadcast %248 : vector<1x32xf32> to vector<16x32xf32>
    %271 = arith.mulf %269, %270 : vector<16x32xf32>
    %272 = vector.broadcast %249 : vector<1x32xf32> to vector<16x32xf32>
    %273 = arith.addf %271, %272 : vector<16x32xf32>
    %c0_126 = arith.constant 0 : index
    %c0_127 = arith.constant 0 : index
    %274 = vector.load %arg16[%c0_126, %c0_127] : memref<32x128xf32, #tpu.memory_space<vmem>>, vector<32x128xf32>
    %cst_128 = arith.constant dense<0.000000e+00> : vector<16x128xf32>
    %275 = tpu.matmul %273, %274, %cst_128 {dimension_numbers = #tpu.dot_dimension_numbers<[1], [0], [0], [1], [0, 0, 1, 1], [], []>} : vector<16x32xf32>, vector<32x128xf32>, vector<16x128xf32> -> vector<16x128xf32>
    %c0_129 = arith.constant 0 : index
    %c0_130 = arith.constant 0 : index
    %276 = vector.load %arg17[%c0_129, %c0_130] : memref<16x128xf32, #tpu.memory_space<vmem>>, vector<16x128xf32>
    tpu.vector_store %arg17[%c0_129, %c0_130], %275 {strides = array<i32>} : memref<16x128xf32, #tpu.memory_space<vmem>>, vector<16x128xf32>,
    return
  }
}

</mosaic_0001>

<llo_original>
// kernel: transformer_forward.1
$region0: #{transformer_forward.1}
  #allocation0 [shape = 'u32[]', space=smem, size = 0x4, offset = 0x4, fixed_abs, tag = 'smem constant byte address 0x4 - core index']
  #allocation1 [shape = 'u32[144,128]{1,0:T(1,128)}', space=vmem, size = 0x12000, scoped, tag = 'internal scratch']
  %s0 = inlined_call_operand.vmem [shape: f32[16,32], index: 0, kind: input, shape index: {}]
  %s1 = inlined_call_operand.vmem [shape: f32[32,32], index: 1, kind: input, shape index: {}]
  %s2 = inlined_call_operand.vmem [shape: f32[2,1,32], index: 2, kind: input, shape index: {}]
  %s3 = inlined_call_operand.vmem [shape: f32[2,1,32], index: 3, kind: input, shape index: {}]
  %s4 = inlined_call_operand.vmem [shape: f32[2,32,96], index: 4, kind: input, shape index: {}]
  %s5 = inlined_call_operand.vmem [shape: f32[2,1,96], index: 5, kind: input, shape index: {}]
  %s6 = inlined_call_operand.vmem [shape: f32[2,32,32], index: 6, kind: input, shape index: {}]
  %s7 = inlined_call_operand.vmem [shape: f32[2,1,32], index: 7, kind: input, shape index: {}]
  %s8 = inlined_call_operand.vmem [shape: f32[2,1,32], index: 8, kind: input, shape index: {}]
  %s9 = inlined_call_operand.vmem [shape: f32[2,1,32], index: 9, kind: input, shape index: {}]
  %s10 = inlined_call_operand.vmem [shape: f32[2,32,128], index: 10, kind: input, shape index: {}]
  %s11 = inlined_call_operand.vmem [shape: f32[2,1,128], index: 11, kind: input, shape index: {}]
  %s12 = inlined_call_operand.vmem [shape: f32[2,128,32], index: 12, kind: input, shape index: {}]
  %s13 = inlined_call_operand.vmem [shape: f32[2,1,32], index: 13, kind: input, shape index: {}]
  %s14 = inlined_call_operand.vmem [shape: f32[1,32], index: 14, kind: input, shape index: {}]
  %s15 = inlined_call_operand.vmem [shape: f32[1,32], index: 15, kind: input, shape index: {}]
  %s16 = inlined_call_operand.vmem [shape: f32[32,128], index: 16, kind: input, shape index: {}]
  %s17 = inlined_call_operand.hbm [shape: f32[16,128], index: 17, kind: output, shape index: {}]
  %s18 = sld [smem:[#allocation0]]
  $region78: #{transformer_forward.1} parent=0
    _
  %s20 = ssub.s32 1, %s18
  %s21 = scalar_select 0, %s20, %s18
  $region1: #{transformer_forward.1} parent=0
    #allocation2 [shape = 'u8[8192]{0}', space=vmem, size = 0x2000, scoped, tag = 'output window, operand 0, single buffered']
    #allocation3 [shape = 's32[1]{0}', space=sflag, size = 0x4, scoped, tag = 'scoped memory for transformer_forward.1']
    %22 = vsyncpa [#allocation3], 0
    // Predicated region
    $region2: #{transformer_forward.1} parent=1 // pred_check
      _
    $region3: #{transformer_forward.1} parent=1 // pred_check_branch
      %24 = sbr.rel (0) target = $region5
    $region4: #{transformer_forward.1} parent=1 // pred_region
      _
    $region5: #{transformer_forward.1} parent=1 // pred_fallthru
      _
    // Predicated region
    $region6: #{transformer_forward.1} parent=1 // pred_check
      _
    $region7: #{transformer_forward.1} parent=1 // pred_check_branch
      %26 = sbr.rel (0) target = $region9
    $region8: #{transformer_forward.1} parent=1 // pred_region
      _
    $region9: #{transformer_forward.1} parent=1 // pred_fallthru
      _
    // Predicated region
    $region10: #{transformer_forward.1} parent=1 // pred_check
      _
    $region11: #{transformer_forward.1} parent=1 // pred_check_branch
      %28 = sbr.rel (0) target = $region13
    $region12: #{transformer_forward.1} parent=1 // pred_region
      _
    $region13: #{transformer_forward.1} parent=1 // pred_fallthru
      _
    // Predicated region
    $region14: #{transformer_forward.1} parent=1 // pred_check
      _
    $region15: #{transformer_forward.1} parent=1 // pred_check_branch
      %30 = sbr.rel (0) target = $region17
    $region16: #{transformer_forward.1} parent=1 // pred_region
      _
    $region17: #{transformer_forward.1} parent=1 // pred_fallthru
      _
    // Predicated region
    $region18: #{transformer_forward.1} parent=1 // pred_check
      _
    $region19: #{transformer_forward.1} parent=1 // pred_check_branch
      %32 = sbr.rel (0) target = $region21
    $region20: #{transformer_forward.1} parent=1 // pred_region
      _
    $region21: #{transformer_forward.1} parent=1 // pred_fallthru
      _
    // Predicated region
    $region22: #{transformer_forward.1} parent=1 // pred_check
      _
    $region23: #{transformer_forward.1} parent=1 // pred_check_branch
      %34 = sbr.rel (0) target = $region25
    $region24: #{transformer_forward.1} parent=1 // pred_region
      _
    $region25: #{transformer_forward.1} parent=1 // pred_fallthru
      _
    // Predicated region
    $region26: #{transformer_forward.1} parent=1 // pred_check
      _
    $region27: #{transformer_forward.1} parent=1 // pred_check_branch
      %36 = sbr.rel (0) target = $region29
    $region28: #{transformer_forward.1} parent=1 // pred_region
      _
    $region29: #{transformer_forward.1} parent=1 // pred_fallthru
      _
    // Predicated region
    $region30: #{transformer_forward.1} parent=1 // pred_check
      _
    $region31: #{transformer_forward.1} parent=1 // pred_check_branch
      %38 = sbr.rel (0) target = $region33
    $region32: #{transformer_forward.1} parent=1 // pred_region
      _
    $region33: #{transformer_forward.1} parent=1 // pred_fallthru
      _
    // Predicated region
    $region34: #{transformer_forward.1} parent=1 // pred_check
      _
    $region35: #{transformer_forward.1} parent=1 // pred_check_branch
      %40 = sbr.rel (0) target = $region37
    $region36: #{transformer_forward.1} parent=1 // pred_region
      _
    $region37: #{transformer_forward.1} parent=1 // pred_fallthru
      _
    // Predicated region
    $region38: #{transformer_forward.1} parent=1 // pred_check
      _
    $region39: #{transformer_forward.1} parent=1 // pred_check_branch
      %42 = sbr.rel (0) target = $region41
    $region40: #{transformer_forward.1} parent=1 // pred_region
      _
    $region41: #{transformer_forward.1} parent=1 // pred_fallthru
      _
    // Predicated region
    $region42: #{transformer_forward.1} parent=1 // pred_check
      _
    $region43: #{transformer_forward.1} parent=1 // pred_check_branch
      %44 = sbr.rel (0) target = $region45
    $region44: #{transformer_forward.1} parent=1 // pred_region
      _
    $region45: #{transformer_forward.1} parent=1 // pred_fallthru
      _
    // Predicated region
    $region46: #{transformer_forward.1} parent=1 // pred_check
      _
    $region47: #{transformer_forward.1} parent=1 // pred_check_branch
      %46 = sbr.rel (0) target = $region49
    $region48: #{transformer_forward.1} parent=1 // pred_region
      _
    $region49: #{transformer_forward.1} parent=1 // pred_fallthru
      _
    // Predicated region
    $region50: #{transformer_forward.1} parent=1 // pred_check
      _
    $region51: #{transformer_forward.1} parent=1 // pred_check_branch
      %48 = sbr.rel (0) target = $region53
    $region52: #{transformer_forward.1} parent=1 // pred_region
      _
    $region53: #{transformer_forward.1} parent=1 // pred_fallthru
      _
    // Predicated region
    $region54: #{transformer_forward.1} parent=1 // pred_check
      _
    $region55: #{transformer_forward.1} parent=1 // pred_check_branch
      %50 = sbr.rel (0) target = $region57
    $region56: #{transformer_forward.1} parent=1 // pred_region
      _
    $region57: #{transformer_forward.1} parent=1 // pred_fallthru
      _
    // Predicated region
    $region58: #{transformer_forward.1} parent=1 // pred_check
      _
    $region59: #{transformer_forward.1} parent=1 // pred_check_branch
      %52 = sbr.rel (0) target = $region61
    $region60: #{transformer_forward.1} parent=1 // pred_region
      _
    $region61: #{transformer_forward.1} parent=1 // pred_fallthru
      _
    // Predicated region
    $region62: #{transformer_forward.1} parent=1 // pred_check
      _
    $region63: #{transformer_forward.1} parent=1 // pred_check_branch
      %54 = sbr.rel (0) target = $region65
    $region64: #{transformer_forward.1} parent=1 // pred_region
      _
    $region65: #{transformer_forward.1} parent=1 // pred_fallthru
      _
    // Predicated region
    $region66: #{transformer_forward.1} parent=1 // pred_check
      _
    $region67: #{transformer_forward.1} parent=1 // pred_check_branch
      %56 = sbr.rel (0) target = $region69
    $region68: #{transformer_forward.1} parent=1 // pred_region
      _
    $region69: #{transformer_forward.1} parent=1 // pred_fallthru
      _
    %v57 = vld [vmem:[%s0] sm:$0xff]
    %v58 = vld [vmem:[%s0 + $0x8] sm:$0xff]
    %v59 = vld [vmem:[%s1] sm:$0xff]
    %v60 = vld [vmem:[%s1 + $0x8] sm:$0xff]
    %v61 = vld [vmem:[%s1 + $0x10] sm:$0xff]
    %v62 = vld [vmem:[%s1 + $0x18] sm:$0xff]
    %v63 = vld [vmem:[%s2] sm:$0x1]
    %v64 = vld [vmem:[%s3] sm:$0x1]
    %vm65 = vcmask 261120
    %v66 = vsel %vm65, %v57, 0.0
    %67 = vadd.xlane.f32.xlu0 %v66
    %v68 = vpop.xlane.xlu0 %67
    %v69 = vsel %vm65, %v58, 0.0
    %70 = vadd.xlane.f32.xlu0 %v69
    %v71 = vpop.xlane.xlu0 %70
    %v72 = vrcp.pop 32.0
    %v73 = vmul.f32 %v68, %v72
    %v74 = vmul.f32 %v71, %v72
    %v75 = vsub.f32 %v57, %v73
    %v76 = vsub.f32 %v58, %v74
    %v77 = vmul.f32 %v75, %v75
    %v78 = vmul.f32 %v76, %v76
    %v79 = vsel %vm65, %v77, 0.0
    %80 = vadd.xlane.f32.xlu0 %v79
    %v81 = vpop.xlane.xlu0 %80
    %v82 = vsel %vm65, %v78, 0.0
    %83 = vadd.xlane.f32.xlu0 %v82
    %v84 = vpop.xlane.xlu0 %83
    %v85 = vmul.f32 %v81, %v72
    %v86 = vmul.f32 %v84, %v72
    %v87 = vadd.f32 %v85, 1e-05
    %v88 = vadd.f32 %v86, 1e-05
    %v89 = vrsqrt.pop %v87
    %v90 = vrsqrt.pop %v88
    %v91 = vmul.f32 %v75, %v89
    %v92 = vmul.f32 %v76, %v90
    %v94 = vlaneseq
    %v95 = vshrl.u32 %v94, 7
    %v96 = vsub.s32 0, %v95
    %v97 = vrot.slane %v63, %v96
    %v99 = vmul.f32 %v91, %v97
    %v100 = vmul.f32 %v92, %v97
    %v102 = vlaneseq
    %v103 = vshrl.u32 %v102, 7
    %v104 = vsub.s32 0, %v103
    %v105 = vrot.slane %v64, %v104
    %v107 = vadd.f32 %v99, %v105
    %v108 = vadd.f32 %v100, %v105
    %v109 = vld [vmem:[%s4] sm:$0xff]
    %v110 = vld [vmem:[%s4 + $0x8] sm:$0xff]
    %v111 = vld [vmem:[%s4 + $0x10] sm:$0xff]
    %v112 = vld [vmem:[%s4 + $0x18] sm:$0xff]
    %v113 = vld [vmem:[%s5] sm:$0x1]
    %v115 = vlaneseq
    %v116 = vshrl.u32 %v115, 7
    %v117 = vsub.s32 0, %v116
    %v118 = vrot.slane %v113, %v117
    %v121 = vsel %vm65, %v107, 0
    %v124 = vsel %vm65, %v108, 0
    %126 = vmatprep.subr.mxu0 0.0
    %127 = vmatpush1.msra.mxu0 %v109
    %128 = vmatprep.subr.mxu0 0.0
    %129 = vmatpush1.msra.mxu0 %v110
    %130 = vmatprep.subr.mxu0 0.0
    %131 = vmatpush1.msra.mxu0 %v111
    %132 = vmatprep.subr.mxu0 0.0
    %133 = vmatpush1.msra.mxu0 %v112
    %134 = vmatprep.subr.mxu0 0.0
    %135 = vmatpush1.msra.mxu0 0.0
    %136 = vmatprep.subr.mxu0 0.0
    %137 = vmatpush1.msra.mxu0 0.0
    %138 = vmatprep.subr.mxu0 0.0
    %139 = vmatpush1.msra.mxu0 0.0
    %140 = vmatprep.subr.mxu0 0.0
    %141 = vmatpush1.msra.mxu0 0.0
    %142 = vmatprep.subr.mxu0 0.0
    %143 = vmatpush1.msra.mxu0 0.0
    %144 = vmatprep.subr.mxu0 0.0
    %145 = vmatpush1.msra.mxu0 0.0
    %146 = vmatprep.subr.mxu0 0.0
    %147 = vmatpush1.msra.mxu0 0.0
    %148 = vmatprep.subr.mxu0 0.0
    %149 = vmatpush1.msra.mxu0 0.0
    %150 = vmatprep.subr.mxu0 0.0
    %151 = vmatpush1.msra.mxu0 0.0
    %152 = vmatprep.subr.mxu0 0.0
    %153 = vmatpush1.msra.mxu0 0.0
    %154 = vmatprep.subr.mxu0 0.0
    %155 = vmatpush1.msra.mxu0 0.0
    %156 = vmatprep.subr.mxu0 0.0
    %157 = vmatpush1.msra.mxu0 0.0
    %158 = vmatprep.subr.mxu0 0.0
    %159 = vmatpush1.msra.mxu0 0.0
    %160 = vmatprep.subr.mxu0 0.0
    %161 = vmatpush1.msra.mxu0 0.0
    %162 = vmatprep.subr.mxu0 0.0
    %163 = vmatpush1.msra.mxu0 0.0
    %164 = vmatprep.subr.mxu0 0.0
    %165 = vmatpush1.msra.mxu0 0.0
    %166 = vmatprep.subr.mxu0 0.0
    %167 = vmatpush1.msra.mxu0 0.0
    %168 = vmatprep.subr.mxu0 0.0
    %169 = vmatpush1.msra.mxu0 0.0
    %170 = vmatprep.subr.mxu0 0.0
    %171 = vmatpush1.msra.mxu0 0.0
    %172 = vmatprep.subr.mxu0 0.0
    %173 = vmatpush1.msra.mxu0 0.0
    %174 = vmatprep.subr.mxu0 0.0
    %175 = vmatpush1.msra.mxu0 0.0
    %176 = vmatprep.subr.mxu0 0.0
    %177 = vmatpush1.msra.mxu0 0.0
    %178 = vmatprep.subr.mxu0 0.0
    %179 = vmatpush1.msra.mxu0 0.0
    %180 = vmatprep.subr.mxu0 0.0
    %181 = vmatpush1.msra.mxu0 0.0
    %182 = vmatprep.subr.mxu0 0.0
    %183 = vmatpush1.msra.mxu0 0.0
    %184 = vmatprep.subr.mxu0 0.0
    %185 = vmatpush1.msra.mxu0 0.0
    %186 = vmatprep.subr.mxu0 0.0
    %187 = vmatpush1.msra.mxu0 0.0
    %188 = vmatprep.subr.mxu0 0.0
    %189 = vmatpush1.msra.mxu0 0.0
    %190 = vmatprep.mubr.f32.mxu0 0.0
    %191 = vmatmul.mubr.f32.gmra.mrb[0].mxu0 %v121
    %v192 = vpop.f32.mrb[0].mxu0
    %v193 = vadd.f32 %v118, %v192
    %v194 = vpop.f32.mrb[0].mxu0
    %195 = vmatprep.mubr.f32.mxu0 0.0
    %196 = vmatmul.mubr.f32.gmra.mrb[0].mxu0 %v124
    %v197 = vpop.f32.mrb[0].mxu0
    %v198 = vadd.f32 %v118, %v197
    %v199 = vpop.f32.mrb[0].mxu0
    %200 = vdwg.mxu0
    %203 = vrot.lane.b32.xlu0 %v193, 112
    %v204 = vpop.permute.xlu0 %203
    %205 = vrot.lane.b32.xlu0 %v198, 112
    %v206 = vpop.permute.xlu0 %205
    %207 = vrot.lane.b32.xlu0 %v193, 96
    %v208 = vpop.permute.xlu0 %207
    %209 = vrot.lane.b32.xlu0 %v198, 96
    %v210 = vpop.permute.xlu0 %209
    %211 = vrot.lane.b32.xlu0 %v204, 96
    %v212 = vpop.permute.xlu0 %211
    %213 = vrot.lane.b32.xlu0 %v206, 96
    %v214 = vpop.permute.xlu0 %213
    %vm215 = vcmask 130048
    %v216 = vsel %vm215, %v193, 0
    %v218 = vsel %vm215, %v198, 0
    %v220 = vsel %vm215, %v204, 0
    %v222 = vsel %vm215, %v206, 0
    %v224 = vsel %vm215, %v208, 0
    %v226 = vsel %vm215, %v210, 0
    %v228 = vsel %vm215, %v212, 0
    %v230 = vsel %vm215, %v214, 0
    %232 = vmatprep.subr.mxu0 0.0
    %233 = vmatpush1.xpose.msra.mxu0 %v224
    %234 = vmatprep.subr.mxu0 0.0
    %235 = vmatpush1.xpose.msra.mxu0 %v226
    %236 = vmatprep.subr.mxu0 0.0
    %237 = vmatpush1.xpose.msra.mxu0 %v228
    %238 = vmatprep.subr.mxu0 0.0
    %239 = vmatpush1.xpose.msra.mxu0 %v230
    %240 = vmatprep.subr.mxu0 0.0
    %241 = vmatpush1.xpose.msra.mxu0 0.0
    %242 = vmatprep.subr.mxu0 0.0
    %243 = vmatpush1.xpose.msra.mxu0 0.0
    %244 = vmatprep.subr.mxu0 0.0
    %245 = vmatpush1.xpose.msra.mxu0 0.0
    %246 = vmatprep.subr.mxu0 0.0
    %247 = vmatpush1.xpose.msra.mxu0 0.0
    %248 = vmatprep.subr.mxu0 0.0
    %249 = vmatpush1.xpose.msra.mxu0 0.0
    %250 = vmatprep.subr.mxu0 0.0
    %251 = vmatpush1.xpose.msra.mxu0 0.0
    %252 = vmatprep.subr.mxu0 0.0
    %253 = vmatpush1.xpose.msra.mxu0 0.0
    %254 = vmatprep.subr.mxu0 0.0
    %255 = vmatpush1.xpose.msra.mxu0 0.0
    %256 = vmatprep.subr.mxu0 0.0
    %257 = vmatpush1.xpose.msra.mxu0 0.0
    %258 = vmatprep.subr.mxu0 0.0
    %259 = vmatpush1.xpose.msra.mxu0 0.0
    %260 = vmatprep.subr.mxu0 0.0
    %261 = vmatpush1.xpose.msra.mxu0 0.0
    %262 = vmatprep.subr.mxu0 0.0
    %263 = vmatpush1.xpose.msra.mxu0 0.0
    %264 = vmatprep.subr.mxu0 0.0
    %265 = vmatpush1.xpose.msra.mxu0 0.0
    %266 = vmatprep.subr.mxu0 0.0
    %267 = vmatpush1.xpose.msra.mxu0 0.0
    %268 = vmatprep.subr.mxu0 0.0
    %269 = vmatpush1.xpose.msra.mxu0 0.0
    %270 = vmatprep.subr.mxu0 0.0
    %271 = vmatpush1.xpose.msra.mxu0 0.0
    %272 = vmatprep.subr.mxu0 0.0
    %273 = vmatpush1.xpose.msra.mxu0 0.0
    %274 = vmatprep.subr.mxu0 0.0
    %275 = vmatpush1.xpose.msra.mxu0 0.0
    %276 = vmatprep.subr.mxu0 0.0
    %277 = vmatpush1.xpose.msra.mxu0 0.0
    %278 = vmatprep.subr.mxu0 0.0
    %279 = vmatpush1.xpose.msra.mxu0 0.0
    %280 = vmatprep.subr.mxu0 0.0
    %281 = vmatpush1.xpose.msra.mxu0 0.0
    %282 = vmatprep.subr.mxu0 0.0
    %283 = vmatpush1.xpose.msra.mxu0 0.0
    %284 = vmatprep.subr.mxu0 0.0
    %285 = vmatpush1.xpose.msra.mxu0 0.0
    %286 = vmatprep.subr.mxu0 0.0
    %287 = vmatpush1.xpose.msra.mxu0 0.0
    %288 = vmatprep.subr.mxu0 0.0
    %289 = vmatpush1.xpose.msra.mxu0 0.0
    %290 = vmatprep.subr.mxu0 0.0
    %291 = vmatpush1.xpose.msra.mxu0 0.0
    %292 = vmatprep.subr.mxu0 0.0
    %293 = vmatpush1.xpose.msra.mxu0 0.0
    %294 = vmatprep.subr.mxu0 0.0
    %295 = vmatpush1.xpose.msra.mxu0 0.0
    %296 = vmatprep.mubr.f32.mxu0 0.0
    %297 = vmatmul.mubr.f32.gmra.mrb[0].mxu0 %v216
    %v298 = vpop.f32.mrb[0].mxu0
    %v299 = vadd.f32 %v59, %v298
    %v300 = vpop.f32.mrb[0].mxu0
    %301 = vmatprep.mubr.f32.mxu0 0.0
    %302 = vmatmul.mubr.f32.gmra.mrb[0].mxu0 %v218
    %v303 = vpop.f32.mrb[0].mxu0
    %v304 = vadd.f32 %v60, %v303
    %v305 = vpop.f32.mrb[0].mxu0
    %306 = vmatprep.mubr.f32.mxu0 0.0
    %307 = vmatmul.mubr.f32.gmra.mrb[0].mxu0 %v220
    %v308 = vpop.f32.mrb[0].mxu0
    %v309 = vadd.f32 %v61, %v308
    %v310 = vpop.f32.mrb[0].mxu0
    %311 = vmatprep.mubr.f32.mxu0 0.0
    %312 = vmatmul.mubr.f32.gmra.mrb[0].mxu0 %v222
    %v313 = vpop.f32.mrb[0].mxu0
    %v314 = vadd.f32 %v62, %v313
    %v315 = vpop.f32.mrb[0].mxu0
    %316 = vdwg.mxu0
    %v317 = vsel %vm65, %v299, -inf
    %318 = vmax.xlane.f32.xlu0 %v317
    %v319 = vpop.xlane.xlu0 %318
    %v320 = vsel %vm65, %v304, -inf
    %321 = vmax.xlane.f32.xlu0 %v320
    %v322 = vpop.xlane.xlu0 %321
    %v323 = vsel %vm65, %v309, -inf
    %324 = vmax.xlane.f32.xlu0 %v323
    %v325 = vpop.xlane.xlu0 %324
    %v326 = vsel %vm65, %v314, -inf
    %327 = vmax.xlane.f32.xlu0 %v326
    %v328 = vpop.xlane.xlu0 %327
    %v329 = vsub.f32 %v299, %v319
    %v330 = vsub.f32 %v304, %v322
    %v331 = vsub.f32 %v309, %v325
    %v332 = vsub.f32 %v314, %v328
    %v333 = vmul.f32 %v329, 1.442695
    %v334 = vpow.pop %v333
    %v335 = vmul.f32 %v330, 1.442695
    %v336 = vpow.pop %v335
    %v337 = vmul.f32 %v331, 1.442695
    %v338 = vpow.pop %v337
    %v339 = vmul.f32 %v332, 1.442695
    %v340 = vpow.pop %v339
    %v341 = vsel %vm65, %v334, 0.0
    %342 = vadd.xlane.f32.xlu0 %v341
    %v343 = vpop.xlane.xlu0 %342
    %v344 = vsel %vm65, %v336, 0.0
    %345 = vadd.xlane.f32.xlu0 %v344
    %v346 = vpop.xlane.xlu0 %345
    %v347 = vsel %vm65, %v338, 0.0
    %348 = vadd.xlane.f32.xlu0 %v347
    %v349 = vpop.xlane.xlu0 %348
    %v350 = vsel %vm65, %v340, 0.0
    %351 = vadd.xlane.f32.xlu0 %v350
    %v352 = vpop.xlane.xlu0 %351
    %v353 = vrcp.pop %v343
    %v354 = vmul.f32 %v334, %v353
    %v355 = vrcp.pop %v346
    %v356 = vmul.f32 %v336, %v355
    %v357 = vrcp.pop %v349
    %v358 = vmul.f32 %v338, %v357
    %v359 = vrcp.pop %v352
    %v360 = vmul.f32 %v340, %v359
    %361 = vrot.lane.b32.xlu0 %v193, 64
    %v362 = vpop.permute.xlu0 %361
    %363 = vrot.lane.b32.xlu0 %v198, 64
    %v364 = vpop.permute.xlu0 %363
    %365 = vrot.lane.b32.xlu0 %v204, 64
    %v366 = vpop.permute.xlu0 %365
    %367 = vrot.lane.b32.xlu0 %v206, 64
    %v368 = vpop.permute.xlu0 %367
    %v374 = vsel %vm65, %v354, 0
    %v377 = vsel %vm65, %v356, 0
    %v380 = vsel %vm65, %v358, 0
    %v383 = vsel %vm65, %v360, 0
    %385 = vmatprep.subr.mxu0 0.0
    %386 = vmatpush1.msra.mxu0 %v362
    %387 = vmatprep.subr.mxu0 0.0
    %388 = vmatpush1.msra.mxu0 %v364
    %389 = vmatprep.subr.mxu0 0.0
    %390 = vmatpush1.msra.mxu0 %v366
    %391 = vmatprep.subr.mxu0 0.0
    %392 = vmatpush1.msra.mxu0 %v368
    %393 = vmatprep.subr.mxu0 0.0
    %394 = vmatpush1.msra.mxu0 0.0
    %395 = vmatprep.subr.mxu0 0.0
    %396 = vmatpush1.msra.mxu0 0.0
    %397 = vmatprep.subr.mxu0 0.0
    %398 = vmatpush1.msra.mxu0 0.0
    %399 = vmatprep.subr.mxu0 0.0
    %400 = vmatpush1.msra.mxu0 0.0
    %401 = vmatprep.subr.mxu0 0.0
    %402 = vmatpush1.msra.mxu0 0.0
    %403 = vmatprep.subr.mxu0 0.0
    %404 = vmatpush1.msra.mxu0 0.0
    %405 = vmatprep.subr.mxu0 0.0
    %406 = vmatpush1.msra.mxu0 0.0
    %407 = vmatprep.subr.mxu0 0.0
    %408 = vmatpush1.msra.mxu0 0.0
    %409 = vmatprep.subr.mxu0 0.0
    %410 = vmatpush1.msra.mxu0 0.0
    %411 = vmatprep.subr.mxu0 0.0
    %412 = vmatpush1.msra.mxu0 0.0
    %413 = vmatprep.subr.mxu0 0.0
    %414 = vmatpush1.msra.mxu0 0.0
    %415 = vmatprep.subr.mxu0 0.0
    %416 = vmatpush1.msra.mxu0 0.0
    %417 = vmatprep.subr.mxu0 0.0
    %418 = vmatpush1.msra.mxu0 0.0
    %419 = vmatprep.subr.mxu0 0.0
    %420 = vmatpush1.msra.mxu0 0.0
    %421 = vmatprep.subr.mxu0 0.0
    %422 = vmatpush1.msra.mxu0 0.0
    %423 = vmatprep.subr.mxu0 0.0
    %424 = vmatpush1.msra.mxu0 0.0
    %425 = vmatprep.subr.mxu0 0.0
    %426 = vmatpush1.msra.mxu0 0.0
    %427 = vmatprep.subr.mxu0 0.0
    %428 = vmatpush1.msra.mxu0 0.0
    %429 = vmatprep.subr.mxu0 0.0
    %430 = vmatpush1.msra.mxu0 0.0
    %431 = vmatprep.subr.mxu0 0.0
    %432 = vmatpush1.msra.mxu0 0.0
    %433 = vmatprep.subr.mxu0 0.0
    %434 = vmatpush1.msra.mxu0 0.0
    %435 = vmatprep.subr.mxu0 0.0
    %436 = vmatpush1.msra.mxu0 0.0
    %437 = vmatprep.subr.mxu0 0.0
    %438 = vmatpush1.msra.mxu0 0.0
    %439 = vmatprep.subr.mxu0 0.0
    %440 = vmatpush1.msra.mxu0 0.0
    %441 = vmatprep.subr.mxu0 0.0
    %442 = vmatpush1.msra.mxu0 0.0
    %443 = vmatprep.subr.mxu0 0.0
    %444 = vmatpush1.msra.mxu0 0.0
    %445 = vmatprep.subr.mxu0 0.0
    %446 = vmatpush1.msra.mxu0 0.0
    %447 = vmatprep.subr.mxu0 0.0
    %448 = vmatpush1.msra.mxu0 0.0
    %449 = vmatprep.mubr.f32.mxu0 0.0
    %450 = vmatmul.mubr.f32.gmra.mrb[0].mxu0 %v374
    %v451 = vpop.f32.mrb[0].mxu0
    %v452 = vadd.f32 0.0, %v451
    %v453 = vpop.f32.mrb[0].mxu0
    %454 = vmatprep.mubr.f32.mxu0 0.0
    %455 = vmatmul.mubr.f32.gmra.mrb[0].mxu0 %v377
    %v456 = vpop.f32.mrb[0].mxu0
    %v457 = vadd.f32 0.0, %v456
    %v458 = vpop.f32.mrb[0].mxu0
    %459 = vmatprep.mubr.f32.mxu0 0.0
    %460 = vmatmul.mubr.f32.gmra.mrb[0].mxu0 %v380
    %v461 = vpop.f32.mrb[0].mxu0
    %v462 = vadd.f32 0.0, %v461
    %v463 = vpop.f32.mrb[0].mxu0
    %464 = vmatprep.mubr.f32.mxu0 0.0
    %465 = vmatmul.mubr.f32.gmra.mrb[0].mxu0 %v383
    %v466 = vpop.f32.mrb[0].mxu0
    %v467 = vadd.f32 0.0, %v466
    %v468 = vpop.f32.mrb[0].mxu0
    %469 = vdwg.mxu0
    %472 = vrot.lane.b32.xlu0 %v462, 16
    %v473 = vpop.permute.xlu0 %472
    %474 = vrot.lane.b32.xlu0 %v467, 16
    %v475 = vpop.permute.xlu0 %474
    %v478 = vsel %vm215, %v452, %v473
    %v479 = vsel %vm215, %v457, %v475
    %v480 = vld [vmem:[%s6] sm:$0xff]
    %v481 = vld [vmem:[%s6 + $0x8] sm:$0xff]
    %v482 = vld [vmem:[%s6 + $0x10] sm:$0xff]
    %v483 = vld [vmem:[%s6 + $0x18] sm:$0xff]
    %v485 = vsel %vm65, %v478, 0
    %v488 = vsel %vm65, %v479, 0
    %490 = vmatprep.subr.mxu0 0.0
    %491 = vmatpush1.msra.mxu0 %v480
    %492 = vmatprep.subr.mxu0 0.0
    %493 = vmatpush1.msra.mxu0 %v481
    %494 = vmatprep.subr.mxu0 0.0
    %495 = vmatpush1.msra.mxu0 %v482
    %496 = vmatprep.subr.mxu0 0.0
    %497 = vmatpush1.msra.mxu0 %v483
    %498 = vmatprep.subr.mxu0 0.0
    %499 = vmatpush1.msra.mxu0 0.0
    %500 = vmatprep.subr.mxu0 0.0
    %501 = vmatpush1.msra.mxu0 0.0
    %502 = vmatprep.subr.mxu0 0.0
    %503 = vmatpush1.msra.mxu0 0.0
    %504 = vmatprep.subr.mxu0 0.0
    %505 = vmatpush1.msra.mxu0 0.0
    %506 = vmatprep.subr.mxu0 0.0
    %507 = vmatpush1.msra.mxu0 0.0
    %508 = vmatprep.subr.mxu0 0.0
    %509 = vmatpush1.msra.mxu0 0.0
    %510 = vmatprep.subr.mxu0 0.0
    %511 = vmatpush1.msra.mxu0 0.0
    %512 = vmatprep.subr.mxu0 0.0
    %513 = vmatpush1.msra.mxu0 0.0
    %514 = vmatprep.subr.mxu0 0.0
    %515 = vmatpush1.msra.mxu0 0.0
    %516 = vmatprep.subr.mxu0 0.0
    %517 = vmatpush1.msra.mxu0 0.0
    %518 = vmatprep.subr.mxu0 0.0
    %519 = vmatpush1.msra.mxu0 0.0
    %520 = vmatprep.subr.mxu0 0.0
    %521 = vmatpush1.msra.mxu0 0.0
    %522 = vmatprep.subr.mxu0 0.0
    %523 = vmatpush1.msra.mxu0 0.0
    %524 = vmatprep.subr.mxu0 0.0
    %525 = vmatpush1.msra.mxu0 0.0
    %526 = vmatprep.subr.mxu0 0.0
    %527 = vmatpush1.msra.mxu0 0.0
    %528 = vmatprep.subr.mxu0 0.0
    %529 = vmatpush1.msra.mxu0 0.0
    %530 = vmatprep.subr.mxu0 0.0
    %531 = vmatpush1.msra.mxu0 0.0
    %532 = vmatprep.subr.mxu0 0.0
    %533 = vmatpush1.msra.mxu0 0.0
    %534 = vmatprep.subr.mxu0 0.0
    %535 = vmatpush1.msra.mxu0 0.0
    %536 = vmatprep.subr.mxu0 0.0
    %537 = vmatpush1.msra.mxu0 0.0
    %538 = vmatprep.subr.mxu0 0.0
    %539 = vmatpush1.msra.mxu0 0.0
    %540 = vmatprep.subr.mxu0 0.0
    %541 = vmatpush1.msra.mxu0 0.0
    %542 = vmatprep.subr.mxu0 0.0
    %543 = vmatpush1.msra.mxu0 0.0
    %544 = vmatprep.subr.mxu0 0.0
    %545 = vmatpush1.msra.mxu0 0.0
    %546 = vmatprep.subr.mxu0 0.0
    %547 = vmatpush1.msra.mxu0 0.0
    %548 = vmatprep.subr.mxu0 0.0
    %549 = vmatpush1.msra.mxu0 0.0
    %550 = vmatprep.subr.mxu0 0.0
    %551 = vmatpush1.msra.mxu0 0.0
    %552 = vmatprep.subr.mxu0 0.0
    %553 = vmatpush1.msra.mxu0 0.0
    %554 = vmatprep.mubr.f32.mxu0 0.0
    %555 = vmatmul.mubr.f32.gmra.mrb[0].mxu0 %v485
    %v556 = vpop.f32.mrb[0].mxu0
    %v557 = vadd.f32 0.0, %v556
    %v558 = vpop.f32.mrb[0].mxu0
    %559 = vmatprep.mubr.f32.mxu0 0.0
    %560 = vmatmul.mubr.f32.gmra.mrb[0].mxu0 %v488
    %v561 = vpop.f32.mrb[0].mxu0
    %v562 = vadd.f32 0.0, %v561
    %v563 = vpop.f32.mrb[0].mxu0
    %564 = vdwg.mxu0
    %v565 = vadd.f32 %v57, %v557
    %v566 = vadd.f32 %v58, %v562
    %v567 = vld [vmem:[%s7] sm:$0x1]
    %v569 = vlaneseq
    %v570 = vshrl.u32 %v569, 7
    %v571 = vsub.s32 0, %v570
    %v572 = vrot.slane %v567, %v571
    %v574 = vadd.f32 %v565, %v572
    %v575 = vadd.f32 %v566, %v572
    %v576 = vld [vmem:[%s8] sm:$0x1]
    %v577 = vld [vmem:[%s9] sm:$0x1]
    %v578 = vsel %vm65, %v574, 0.0
    %579 = vadd.xlane.f32.xlu0 %v578
    %v580 = vpop.xlane.xlu0 %579
    %v581 = vsel %vm65, %v575, 0.0
    %582 = vadd.xlane.f32.xlu0 %v581
    %v583 = vpop.xlane.xlu0 %582
    %v584 = vmul.f32 %v580, %v72
    %v585 = vmul.f32 %v583, %v72
    %v586 = vsub.f32 %v574, %v584
    %v587 = vsub.f32 %v575, %v585
    %v588 = vmul.f32 %v586, %v586
    %v589 = vmul.f32 %v587, %v587
    %v590 = vsel %vm65, %v588, 0.0
    %591 = vadd.xlane.f32.xlu0 %v590
    %v592 = vpop.xlane.xlu0 %591
    %v593 = vsel %vm65, %v589, 0.0
    %594 = vadd.xlane.f32.xlu0 %v593
    %v595 = vpop.xlane.xlu0 %594
    %v596 = vmul.f32 %v592, %v72
    %v597 = vmul.f32 %v595, %v72
    %v598 = vadd.f32 %v596, 1e-05
    %v599 = vadd.f32 %v597, 1e-05
    %v600 = vrsqrt.pop %v598
    %v601 = vrsqrt.pop %v599
    %v602 = vmul.f32 %v586, %v600
    %v603 = vmul.f32 %v587, %v601
    %v605 = vlaneseq
    %v606 = vshrl.u32 %v605, 7
    %v607 = vsub.s32 0, %v606
    %v608 = vrot.slane %v576, %v607
    %v610 = vmul.f32 %v602, %v608
    %v611 = vmul.f32 %v603, %v608
    %v613 = vlaneseq
    %v614 = vshrl.u32 %v613, 7
    %v615 = vsub.s32 0, %v614
    %v616 = vrot.slane %v577, %v615
    %v618 = vadd.f32 %v610, %v616
    %v619 = vadd.f32 %v611, %v616
    %v620 = vld [vmem:[%s10] sm:$0xff]
    %v621 = vld [vmem:[%s10 + $0x8] sm:$0xff]
    %v622 = vld [vmem:[%s10 + $0x10] sm:$0xff]
    %v623 = vld [vmem:[%s10 + $0x18] sm:$0xff]
    %v624 = vld [vmem:[%s11] sm:$0x1]
    %v626 = vlaneseq
    %v627 = vshrl.u32 %v626, 7
    %v628 = vsub.s32 0, %v627
    %v629 = vrot.slane %v624, %v628
    %v632 = vsel %vm65, %v618, 0
    %v635 = vsel %vm65, %v619, 0
    %637 = vmatprep.subr.mxu0 0.0
    %638 = vmatpush1.msra.mxu0 %v620
    %639 = vmatprep.subr.mxu0 0.0
    %640 = vmatpush1.msra.mxu0 %v621
    %641 = vmatprep.subr.mxu0 0.0
    %642 = vmatpush1.msra.mxu0 %v622
    %643 = vmatprep.subr.mxu0 0.0
    %644 = vmatpush1.msra.mxu0 %v623
    %645 = vmatprep.subr.mxu0 0.0
    %646 = vmatpush1.msra.mxu0 0.0
    %647 = vmatprep.subr.mxu0 0.0
    %648 = vmatpush1.msra.mxu0 0.0
    %649 = vmatprep.subr.mxu0 0.0
    %650 = vmatpush1.msra.mxu0 0.0
    %651 = vmatprep.subr.mxu0 0.0
    %652 = vmatpush1.msra.mxu0 0.0
    %653 = vmatprep.subr.mxu0 0.0
    %654 = vmatpush1.msra.mxu0 0.0
    %655 = vmatprep.subr.mxu0 0.0
    %656 = vmatpush1.msra.mxu0 0.0
    %657 = vmatprep.subr.mxu0 0.0
    %658 = vmatpush1.msra.mxu0 0.0
    %659 = vmatprep.subr.mxu0 0.0
    %660 = vmatpush1.msra.mxu0 0.0
    %661 = vmatprep.subr.mxu0 0.0
    %662 = vmatpush1.msra.mxu0 0.0
    %663 = vmatprep.subr.mxu0 0.0
    %664 = vmatpush1.msra.mxu0 0.0
    %665 = vmatprep.subr.mxu0 0.0
    %666 = vmatpush1.msra.mxu0 0.0
    %667 = vmatprep.subr.mxu0 0.0
    %668 = vmatpush1.msra.mxu0 0.0
    %669 = vmatprep.subr.mxu0 0.0
    %670 = vmatpush1.msra.mxu0 0.0
    %671 = vmatprep.subr.mxu0 0.0
    %672 = vmatpush1.msra.mxu0 0.0
    %673 = vmatprep.subr.mxu0 0.0
    %674 = vmatpush1.msra.mxu0 0.0
    %675 = vmatprep.subr.mxu0 0.0
    %676 = vmatpush1.msra.mxu0 0.0
    %677 = vmatprep.subr.mxu0 0.0
    %678 = vmatpush1.msra.mxu0 0.0
    %679 = vmatprep.subr.mxu0 0.0
    %680 = vmatpush1.msra.mxu0 0.0
    %681 = vmatprep.subr.mxu0 0.0
    %682 = vmatpush1.msra.mxu0 0.0
    %683 = vmatprep.subr.mxu0 0.0
    %684 = vmatpush1.msra.mxu0 0.0
    %685 = vmatprep.subr.mxu0 0.0
    %686 = vmatpush1.msra.mxu0 0.0
    %687 = vmatprep.subr.mxu0 0.0
    %688 = vmatpush1.msra.mxu0 0.0
    %689 = vmatprep.subr.mxu0 0.0
    %690 = vmatpush1.msra.mxu0 0.0
    %691 = vmatprep.subr.mxu0 0.0
    %692 = vmatpush1.msra.mxu0 0.0
    %693 = vmatprep.subr.mxu0 0.0
    %694 = vmatpush1.msra.mxu0 0.0
    %695 = vmatprep.subr.mxu0 0.0
    %696 = vmatpush1.msra.mxu0 0.0
    %697 = vmatprep.subr.mxu0 0.0
    %698 = vmatpush1.msra.mxu0 0.0
    %699 = vmatprep.subr.mxu0 0.0
    %700 = vmatpush1.msra.mxu0 0.0
    %701 = vmatprep.mubr.f32.mxu0 0.0
    %702 = vmatmul.mubr.f32.gmra.mrb[0].mxu0 %v632
    %v703 = vpop.f32.mrb[0].mxu0
    %v704 = vadd.f32 %v629, %v703
    %v705 = vpop.f32.mrb[0].mxu0
    %706 = vmatprep.mubr.f32.mxu0 0.0
    %707 = vmatmul.mubr.f32.gmra.mrb[0].mxu0 %v635
    %v708 = vpop.f32.mrb[0].mxu0
    %v709 = vadd.f32 %v629, %v708
    %v710 = vpop.f32.mrb[0].mxu0
    %711 = vdwg.mxu0
    %v712 = vmul.f32 %v704, 0.5
    %v713 = vmul.f32 %v709, 0.5
    %v714 = vmul.f32 %v704, 0.044715
    %v715 = vmul.f32 %v709, 0.044715
    %v716 = vmul.f32 %v714, %v704
    %v717 = vmul.f32 %v715, %v709
    %v718 = vmul.f32 %v716, %v704
    %v719 = vmul.f32 %v717, %v709
    %v720 = vadd.f32 %v704, %v718
    %v721 = vadd.f32 %v709, %v719
    %v722 = vmul.f32 %v720, 0.7978846
    %v723 = vmul.f32 %v721, 0.7978846
    %v724 = vtanh.pop %v722
    %v725 = vtanh.pop %v723
    %v726 = vadd.f32 %v724, 1.0
    %v727 = vadd.f32 %v725, 1.0
    %v728 = vmul.f32 %v712, %v726
    %v729 = vmul.f32 %v713, %v727
    %v730 = vld [vmem:[%s12] sm:$0xff]
    %v731 = vld [vmem:[%s12 + $0x8] sm:$0xff]
    %v732 = vld [vmem:[%s12 + $0x10] sm:$0xff]
    %v733 = vld [vmem:[%s12 + $0x18] sm:$0xff]
    %v734 = vld [vmem:[%s12 + $0x20] sm:$0xff]
    %v735 = vld [vmem:[%s12 + $0x28] sm:$0xff]
    %v736 = vld [vmem:[%s12 + $0x30] sm:$0xff]
    %v737 = vld [vmem:[%s12 + $0x38] sm:$0xff]
    %v738 = vld [vmem:[%s12 + $0x40] sm:$0xff]
    %v739 = vld [vmem:[%s12 + $0x48] sm:$0xff]
    %v740 = vld [vmem:[%s12 + $0x50] sm:$0xff]
    %v741 = vld [vmem:[%s12 + $0x58] sm:$0xff]
    %v742 = vld [vmem:[%s12 + $0x60] sm:$0xff]
    %v743 = vld [vmem:[%s12 + $0x68] sm:$0xff]
    %v744 = vld [vmem:[%s12 + $0x70] sm:$0xff]
    %v745 = vld [vmem:[%s12 + $0x78] sm:$0xff]
    %746 = vmatprep.subr.mxu0 0.0
    %747 = vmatpush1.msra.mxu0 %v730
    %748 = vmatprep.subr.mxu0 0.0
    %749 = vmatpush1.msra.mxu0 %v731
    %750 = vmatprep.subr.mxu0 0.0
    %751 = vmatpush1.msra.mxu0 %v732
    %752 = vmatprep.subr.mxu0 0.0
    %753 = vmatpush1.msra.mxu0 %v733
    %754 = vmatprep.subr.mxu0 0.0
    %755 = vmatpush1.msra.mxu0 %v734
    %756 = vmatprep.subr.mxu0 0.0
    %757 = vmatpush1.msra.mxu0 %v735
    %758 = vmatprep.subr.mxu0 0.0
    %759 = vmatpush1.msra.mxu0 %v736
    %760 = vmatprep.subr.mxu0 0.0
    %761 = vmatpush1.msra.mxu0 %v737
    %762 = vmatprep.subr.mxu0 0.0
    %763 = vmatpush1.msra.mxu0 %v738
    %764 = vmatprep.subr.mxu0 0.0
    %765 = vmatpush1.msra.mxu0 %v739
    %766 = vmatprep.subr.mxu0 0.0
    %767 = vmatpush1.msra.mxu0 %v740
    %768 = vmatprep.subr.mxu0 0.0
    %769 = vmatpush1.msra.mxu0 %v741
    %770 = vmatprep.subr.mxu0 0.0
    %771 = vmatpush1.msra.mxu0 %v742
    %772 = vmatprep.subr.mxu0 0.0
    %773 = vmatpush1.msra.mxu0 %v743
    %774 = vmatprep.subr.mxu0 0.0
    %775 = vmatpush1.msra.mxu0 %v744
    %776 = vmatprep.subr.mxu0 0.0
    %777 = vmatpush1.msra.mxu0 %v745
    %778 = vmatprep.subr.mxu0 0.0
    %779 = vmatpush1.msra.mxu0 0.0
    %780 = vmatprep.subr.mxu0 0.0
    %781 = vmatpush1.msra.mxu0 0.0
    %782 = vmatprep.subr.mxu0 0.0
    %783 = vmatpush1.msra.mxu0 0.0
    %784 = vmatprep.subr.mxu0 0.0
    %785 = vmatpush1.msra.mxu0 0.0
    %786 = vmatprep.subr.mxu0 0.0
    %787 = vmatpush1.msra.mxu0 0.0
    %788 = vmatprep.subr.mxu0 0.0
    %789 = vmatpush1.msra.mxu0 0.0
    %790 = vmatprep.subr.mxu0 0.0
    %791 = vmatpush1.msra.mxu0 0.0
    %792 = vmatprep.subr.mxu0 0.0
    %793 = vmatpush1.msra.mxu0 0.0
    %794 = vmatprep.subr.mxu0 0.0
    %795 = vmatpush1.msra.mxu0 0.0
    %796 = vmatprep.subr.mxu0 0.0
    %797 = vmatpush1.msra.mxu0 0.0
    %798 = vmatprep.subr.mxu0 0.0
    %799 = vmatpush1.msra.mxu0 0.0
    %800 = vmatprep.subr.mxu0 0.0
    %801 = vmatpush1.msra.mxu0 0.0
    %802 = vmatprep.subr.mxu0 0.0
    %803 = vmatpush1.msra.mxu0 0.0
    %804 = vmatprep.subr.mxu0 0.0
    %805 = vmatpush1.msra.mxu0 0.0
    %806 = vmatprep.subr.mxu0 0.0
    %807 = vmatpush1.msra.mxu0 0.0
    %808 = vmatprep.subr.mxu0 0.0
    %809 = vmatpush1.msra.mxu0 0.0
    %810 = vmatprep.mubr.f32.mxu0 0.0
    %811 = vmatmul.mubr.f32.gmra.mrb[0].mxu0 %v728
    %v812 = vpop.f32.mrb[0].mxu0
    %v813 = vadd.f32 0.0, %v812
    %v814 = vpop.f32.mrb[0].mxu0
    %815 = vmatprep.mubr.f32.mxu0 0.0
    %816 = vmatmul.mubr.f32.gmra.mrb[0].mxu0 %v729
    %v817 = vpop.f32.mrb[0].mxu0
    %v818 = vadd.f32 0.0, %v817
    %v819 = vpop.f32.mrb[0].mxu0
    %820 = vdwg.mxu0
    %v821 = vadd.f32 %v574, %v813
    %v822 = vadd.f32 %v575, %v818
    %v823 = vld [vmem:[%s13] sm:$0x1]
    %v825 = vlaneseq
    %v826 = vshrl.u32 %v825, 7
    %v827 = vsub.s32 0, %v826
    %v828 = vrot.slane %v823, %v827
    %v830 = vadd.f32 %v821, %v828
    %v831 = vadd.f32 %v822, %v828
    %s832 = scalar_lea.vmem %s2, 1
    %v833 = vld [vmem:[%s832] sm:$0x1]
    %s834 = scalar_lea.vmem %s3, 1
    %v835 = vld [vmem:[%s834] sm:$0x1]
    %v836 = vsel %vm65, %v830, 0.0
    %837 = vadd.xlane.f32.xlu0 %v836
    %v838 = vpop.xlane.xlu0 %837
    %v839 = vsel %vm65, %v831, 0.0
    %840 = vadd.xlane.f32.xlu0 %v839
    %v841 = vpop.xlane.xlu0 %840
    %v842 = vmul.f32 %v838, %v72
    %v843 = vmul.f32 %v841, %v72
    %v844 = vsub.f32 %v830, %v842
    %v845 = vsub.f32 %v831, %v843
    %v846 = vmul.f32 %v844, %v844
    %v847 = vmul.f32 %v845, %v845
    %v848 = vsel %vm65, %v846, 0.0
    %849 = vadd.xlane.f32.xlu0 %v848
    %v850 = vpop.xlane.xlu0 %849
    %v851 = vsel %vm65, %v847, 0.0
    %852 = vadd.xlane.f32.xlu0 %v851
    %v853 = vpop.xlane.xlu0 %852
    %v854 = vmul.f32 %v850, %v72
    %v855 = vmul.f32 %v853, %v72
    %v856 = vadd.f32 %v854, 1e-05
    %v857 = vadd.f32 %v855, 1e-05
    %v858 = vrsqrt.pop %v856
    %v859 = vrsqrt.pop %v857
    %v860 = vmul.f32 %v844, %v858
    %v861 = vmul.f32 %v845, %v859
    %v863 = vlaneseq
    %v864 = vshrl.u32 %v863, 7
    %v865 = vsub.s32 0, %v864
    %v866 = vrot.slane %v833, %v865
    %v868 = vmul.f32 %v860, %v866
    %v869 = vmul.f32 %v861, %v866
    %v871 = vlaneseq
    %v872 = vshrl.u32 %v871, 7
    %v873 = vsub.s32 0, %v872
    %v874 = vrot.slane %v835, %v873
    %v876 = vadd.f32 %v868, %v874
    %v877 = vadd.f32 %v869, %v874
    %s878 = scalar_lea.vmem %s4, 32
    %v879 = vld [vmem:[%s878] sm:$0xff]
    %v880 = vld [vmem:[%s878 + $0x8] sm:$0xff]
    %v881 = vld [vmem:[%s878 + $0x10] sm:$0xff]
    %v882 = vld [vmem:[%s878 + $0x18] sm:$0xff]
    %s883 = scalar_lea.vmem %s5, 1
    %v884 = vld [vmem:[%s883] sm:$0x1]
    %v886 = vlaneseq
    %v887 = vshrl.u32 %v886, 7
    %v888 = vsub.s32 0, %v887
    %v889 = vrot.slane %v884, %v888
    %v892 = vsel %vm65, %v876, 0
    %v895 = vsel %vm65, %v877, 0
    %897 = vmatprep.subr.mxu0 0.0
    %898 = vmatpush1.msra.mxu0 %v879
    %899 = vmatprep.subr.mxu0 0.0
    %900 = vmatpush1.msra.mxu0 %v880
    %901 = vmatprep.subr.mxu0 0.0
    %902 = vmatpush1.msra.mxu0 %v881
    %903 = vmatprep.subr.mxu0 0.0
    %904 = vmatpush1.msra.mxu0 %v882
    %905 = vmatprep.subr.mxu0 0.0
    %906 = vmatpush1.msra.mxu0 0.0
    %907 = vmatprep.subr.mxu0 0.0
    %908 = vmatpush1.msra.mxu0 0.0
    %909 = vmatprep.subr.mxu0 0.0
    %910 = vmatpush1.msra.mxu0 0.0
    %911 = vmatprep.subr.mxu0 0.0
    %912 = vmatpush1.msra.mxu0 0.0
    %913 = vmatprep.subr.mxu0 0.0
    %914 = vmatpush1.msra.mxu0 0.0
    %915 = vmatprep.subr.mxu0 0.0
    %916 = vmatpush1.msra.mxu0 0.0
    %917 = vmatprep.subr.mxu0 0.0
    %918 = vmatpush1.msra.mxu0 0.0
    %919 = vmatprep.subr.mxu0 0.0
    %920 = vmatpush1.msra.mxu0 0.0
    %921 = vmatprep.subr.mxu0 0.0
    %922 = vmatpush1.msra.mxu0 0.0
    %923 = vmatprep.subr.mxu0 0.0
    %924 = vmatpush1.msra.mxu0 0.0
    %925 = vmatprep.subr.mxu0 0.0
    %926 = vmatpush1.msra.mxu0 0.0
    %927 = vmatprep.subr.mxu0 0.0
    %928 = vmatpush1.msra.mxu0 0.0
    %929 = vmatprep.subr.mxu0 0.0
    %930 = vmatpush1.msra.mxu0 0.0
    %931 = vmatprep.subr.mxu0 0.0
    %932 = vmatpush1.msra.mxu0 0.0
    %933 = vmatprep.subr.mxu0 0.0
    %934 = vmatpush1.msra.mxu0 0.0
    %935 = vmatprep.subr.mxu0 0.0
    %936 = vmatpush1.msra.mxu0 0.0
    %937 = vmatprep.subr.mxu0 0.0
    %938 = vmatpush1.msra.mxu0 0.0
    %939 = vmatprep.subr.mxu0 0.0
    %940 = vmatpush1.msra.mxu0 0.0
    %941 = vmatprep.subr.mxu0 0.0
    %942 = vmatpush1.msra.mxu0 0.0
    %943 = vmatprep.subr.mxu0 0.0
    %944 = vmatpush1.msra.mxu0 0.0
    %945 = vmatprep.subr.mxu0 0.0
    %946 = vmatpush1.msra.mxu0 0.0
    %947 = vmatprep.subr.mxu0 0.0
    %948 = vmatpush1.msra.mxu0 0.0
    %949 = vmatprep.subr.mxu0 0.0
    %950 = vmatpush1.msra.mxu0 0.0
    %951 = vmatprep.subr.mxu0 0.0
    %952 = vmatpush1.msra.mxu0 0.0
    %953 = vmatprep.subr.mxu0 0.0
    %954 = vmatpush1.msra.mxu0 0.0
    %955 = vmatprep.subr.mxu0 0.0
    %956 = vmatpush1.msra.mxu0 0.0
    %957 = vmatprep.subr.mxu0 0.0
    %958 = vmatpush1.msra.mxu0 0.0
    %959 = vmatprep.subr.mxu0 0.0
    %960 = vmatpush1.msra.mxu0 0.0
    %961 = vmatprep.mubr.f32.mxu0 0.0
    %962 = vmatmul.mubr.f32.gmra.mrb[0].mxu0 %v892
    %v963 = vpop.f32.mrb[0].mxu0
    %v964 = vadd.f32 %v889, %v963
    %v965 = vpop.f32.mrb[0].mxu0
    %966 = vmatprep.mubr.f32.mxu0 0.0
    %967 = vmatmul.mubr.f32.gmra.mrb[0].mxu0 %v895
    %v968 = vpop.f32.mrb[0].mxu0
    %v969 = vadd.f32 %v889, %v968
    %v970 = vpop.f32.mrb[0].mxu0
    %971 = vdwg.mxu0
    %974 = vrot.lane.b32.xlu0 %v964, 112
    %v975 = vpop.permute.xlu0 %974
    %976 = vrot.lane.b32.xlu0 %v969, 112
    %v977 = vpop.permute.xlu0 %976
    %978 = vrot.lane.b32.xlu0 %v964, 96
    %v979 = vpop.permute.xlu0 %978
    %980 = vrot.lane.b32.xlu0 %v969, 96
    %v981 = vpop.permute.xlu0 %980
    %982 = vrot.lane.b32.xlu0 %v975, 96
    %v983 = vpop.permute.xlu0 %982
    %984 = vrot.lane.b32.xlu0 %v977, 96
    %v985 = vpop.permute.xlu0 %984
    %v986 = vsel %vm215, %v964, 0
    %v988 = vsel %vm215, %v969, 0
    %v990 = vsel %vm215, %v975, 0
    %v992 = vsel %vm215, %v977, 0
    %v994 = vsel %vm215, %v979, 0
    %v996 = vsel %vm215, %v981, 0
    %v998 = vsel %vm215, %v983, 0
    %v1000 = vsel %vm215, %v985, 0
    %1002 = vmatprep.subr.mxu0 0.0
    %1003 = vmatpush1.xpose.msra.mxu0 %v994
    %1004 = vmatprep.subr.mxu0 0.0
    %1005 = vmatpush1.xpose.msra.mxu0 %v996
    %1006 = vmatprep.subr.mxu0 0.0
    %1007 = vmatpush1.xpose.msra.mxu0 %v998
    %1008 = vmatprep.subr.mxu0 0.0
    %1009 = vmatpush1.xpose.msra.mxu0 %v1000
    %1010 = vmatprep.subr.mxu0 0.0
    %1011 = vmatpush1.xpose.msra.mxu0 0.0
    %1012 = vmatprep.subr.mxu0 0.0
    %1013 = vmatpush1.xpose.msra.mxu0 0.0
    %1014 = vmatprep.subr.mxu0 0.0
    %1015 = vmatpush1.xpose.msra.mxu0 0.0
    %1016 = vmatprep.subr.mxu0 0.0
    %1017 = vmatpush1.xpose.msra.mxu0 0.0
    %1018 = vmatprep.subr.mxu0 0.0
    %1019 = vmatpush1.xpose.msra.mxu0 0.0
    %1020 = vmatprep.subr.mxu0 0.0
    %1021 = vmatpush1.xpose.msra.mxu0 0.0
    %1022 = vmatprep.subr.mxu0 0.0
    %1023 = vmatpush1.xpose.msra.mxu0 0.0
    %1024 = vmatprep.subr.mxu0 0.0
    %1025 = vmatpush1.xpose.msra.mxu0 0.0
    %1026 = vmatprep.subr.mxu0 0.0
    %1027 = vmatpush1.xpose.msra.mxu0 0.0
    %1028 = vmatprep.subr.mxu0 0.0
    %1029 = vmatpush1.xpose.msra.mxu0 0.0
    %1030 = vmatprep.subr.mxu0 0.0
    %1031 = vmatpush1.xpose.msra.mxu0 0.0
    %1032 = vmatprep.subr.mxu0 0.0
    %1033 = vmatpush1.xpose.msra.mxu0 0.0
    %1034 = vmatprep.subr.mxu0 0.0
    %1035 = vmatpush1.xpose.msra.mxu0 0.0
    %1036 = vmatprep.subr.mxu0 0.0
    %1037 = vmatpush1.xpose.msra.mxu0 0.0
    %1038 = vmatprep.subr.mxu0 0.0
    %1039 = vmatpush1.xpose.msra.mxu0 0.0
    %1040 = vmatprep.subr.mxu0 0.0
    %1041 = vmatpush1.xpose.msra.mxu0 0.0
    %1042 = vmatprep.subr.mxu0 0.0
    %1043 = vmatpush1.xpose.msra.mxu0 0.0
    %1044 = vmatprep.subr.mxu0 0.0
    %1045 = vmatpush1.xpose.msra.mxu0 0.0
    %1046 = vmatprep.subr.mxu0 0.0
    %1047 = vmatpush1.xpose.msra.mxu0 0.0
    %1048 = vmatprep.subr.mxu0 0.0
    %1049 = vmatpush1.xpose.msra.mxu0 0.0
    %1050 = vmatprep.subr.mxu0 0.0
    %1051 = vmatpush1.xpose.msra.mxu0 0.0
    %1052 = vmatprep.subr.mxu0 0.0
    %1053 = vmatpush1.xpose.msra.mxu0 0.0
    %1054 = vmatprep.subr.mxu0 0.0
    %1055 = vmatpush1.xpose.msra.mxu0 0.0
    %1056 = vmatprep.subr.mxu0 0.0
    %1057 = vmatpush1.xpose.msra.mxu0 0.0
    %1058 = vmatprep.subr.mxu0 0.0
    %1059 = vmatpush1.xpose.msra.mxu0 0.0
    %1060 = vmatprep.subr.mxu0 0.0
    %1061 = vmatpush1.xpose.msra.mxu0 0.0
    %1062 = vmatprep.subr.mxu0 0.0
    %1063 = vmatpush1.xpose.msra.mxu0 0.0
    %1064 = vmatprep.subr.mxu0 0.0
    %1065 = vmatpush1.xpose.msra.mxu0 0.0
    %1066 = vmatprep.mubr.f32.mxu0 0.0
    %1067 = vmatmul.mubr.f32.gmra.mrb[0].mxu0 %v986
    %v1068 = vpop.f32.mrb[0].mxu0
    %v1069 = vadd.f32 %v59, %v1068
    %v1070 = vpop.f32.mrb[0].mxu0
    %1071 = vmatprep.mubr.f32.mxu0 0.0
    %1072 = vmatmul.mubr.f32.gmra.mrb[0].mxu0 %v988
    %v1073 = vpop.f32.mrb[0].mxu0
    %v1074 = vadd.f32 %v60, %v1073
    %v1075 = vpop.f32.mrb[0].mxu0
    %1076 = vmatprep.mubr.f32.mxu0 0.0
    %1077 = vmatmul.mubr.f32.gmra.mrb[0].mxu0 %v990
    %v1078 = vpop.f32.mrb[0].mxu0
    %v1079 = vadd.f32 %v61, %v1078
    %v1080 = vpop.f32.mrb[0].mxu0
    %1081 = vmatprep.mubr.f32.mxu0 0.0
    %1082 = vmatmul.mubr.f32.gmra.mrb[0].mxu0 %v992
    %v1083 = vpop.f32.mrb[0].mxu0
    %v1084 = vadd.f32 %v62, %v1083
    %v1085 = vpop.f32.mrb[0].mxu0
    %1086 = vdwg.mxu0
    %v1087 = vsel %vm65, %v1069, -inf
    %1088 = vmax.xlane.f32.xlu0 %v1087
    %v1089 = vpop.xlane.xlu0 %1088
    %v1090 = vsel %vm65, %v1074, -inf
    %1091 = vmax.xlane.f32.xlu0 %v1090
    %v1092 = vpop.xlane.xlu0 %1091
    %v1093 = vsel %vm65, %v1079, -inf
    %1094 = vmax.xlane.f32.xlu0 %v1093
    %v1095 = vpop.xlane.xlu0 %1094
    %v1096 = vsel %vm65, %v1084, -inf
    %1097 = vmax.xlane.f32.xlu0 %v1096
    %v1098 = vpop.xlane.xlu0 %1097
    %v1099 = vsub.f32 %v1069, %v1089
    %v1100 = vsub.f32 %v1074, %v1092
    %v1101 = vsub.f32 %v1079, %v1095
    %v1102 = vsub.f32 %v1084, %v1098
    %v1103 = vmul.f32 %v1099, 1.442695
    %v1104 = vpow.pop %v1103
    %v1105 = vmul.f32 %v1100, 1.442695
    %v1106 = vpow.pop %v1105
    %v1107 = vmul.f32 %v1101, 1.442695
    %v1108 = vpow.pop %v1107
    %v1109 = vmul.f32 %v1102, 1.442695
    %v1110 = vpow.pop %v1109
    %v1111 = vsel %vm65, %v1104, 0.0
    %1112 = vadd.xlane.f32.xlu0 %v1111
    %v1113 = vpop.xlane.xlu0 %1112
    %v1114 = vsel %vm65, %v1106, 0.0
    %1115 = vadd.xlane.f32.xlu0 %v1114
    %v1116 = vpop.xlane.xlu0 %1115
    %v1117 = vsel %vm65, %v1108, 0.0
    %1118 = vadd.xlane.f32.xlu0 %v1117
    %v1119 = vpop.xlane.xlu0 %1118
    %v1120 = vsel %vm65, %v1110, 0.0
    %1121 = vadd.xlane.f32.xlu0 %v1120
    %v1122 = vpop.xlane.xlu0 %1121
    %v1123 = vrcp.pop %v1113
    %v1124 = vmul.f32 %v1104, %v1123
    %v1125 = vrcp.pop %v1116
    %v1126 = vmul.f32 %v1106, %v1125
    %v1127 = vrcp.pop %v1119
    %v1128 = vmul.f32 %v1108, %v1127
    %v1129 = vrcp.pop %v1122
    %v1130 = vmul.f32 %v1110, %v1129
    %1131 = vrot.lane.b32.xlu0 %v964, 64
    %v1132 = vpop.permute.xlu0 %1131
    %1133 = vrot.lane.b32.xlu0 %v969, 64
    %v1134 = vpop.permute.xlu0 %1133
    %1135 = vrot.lane.b32.xlu0 %v975, 64
    %v1136 = vpop.permute.xlu0 %1135
    %1137 = vrot.lane.b32.xlu0 %v977, 64
    %v1138 = vpop.permute.xlu0 %1137
    %v1144 = vsel %vm65, %v1124, 0
    %v1147 = vsel %vm65, %v1126, 0
    %v1150 = vsel %vm65, %v1128, 0
    %v1153 = vsel %vm65, %v1130, 0
    %1155 = vmatprep.subr.mxu0 0.0
    %1156 = vmatpush1.msra.mxu0 %v1132
    %1157 = vmatprep.subr.mxu0 0.0
    %1158 = vmatpush1.msra.mxu0 %v1134
    %1159 = vmatprep.subr.mxu0 0.0
    %1160 = vmatpush1.msra.mxu0 %v1136
    %1161 = vmatprep.subr.mxu0 0.0
    %1162 = vmatpush1.msra.mxu0 %v1138
    %1163 = vmatprep.subr.mxu0 0.0
    %1164 = vmatpush1.msra.mxu0 0.0
    %1165 = vmatprep.subr.mxu0 0.0
    %1166 = vmatpush1.msra.mxu0 0.0
    %1167 = vmatprep.subr.mxu0 0.0
    %1168 = vmatpush1.msra.mxu0 0.0
    %1169 = vmatprep.subr.mxu0 0.0
    %1170 = vmatpush1.msra.mxu0 0.0
    %1171 = vmatprep.subr.mxu0 0.0
    %1172 = vmatpush1.msra.mxu0 0.0
    %1173 = vmatprep.subr.mxu0 0.0
    %1174 = vmatpush1.msra.mxu0 0.0
    %1175 = vmatprep.subr.mxu0 0.0
    %1176 = vmatpush1.msra.mxu0 0.0
    %1177 = vmatprep.subr.mxu0 0.0
    %1178 = vmatpush1.msra.mxu0 0.0
    %1179 = vmatprep.subr.mxu0 0.0
    %1180 = vmatpush1.msra.mxu0 0.0
    %1181 = vmatprep.subr.mxu0 0.0
    %1182 = vmatpush1.msra.mxu0 0.0
    %1183 = vmatprep.subr.mxu0 0.0
    %1184 = vmatpush1.msra.mxu0 0.0
    %1185 = vmatprep.subr.mxu0 0.0
    %1186 = vmatpush1.msra.mxu0 0.0
    %1187 = vmatprep.subr.mxu0 0.0
    %1188 = vmatpush1.msra.mxu0 0.0
    %1189 = vmatprep.subr.mxu0 0.0
    %1190 = vmatpush1.msra.mxu0 0.0
    %1191 = vmatprep.subr.mxu0 0.0
    %1192 = vmatpush1.msra.mxu0 0.0
    %1193 = vmatprep.subr.mxu0 0.0
    %1194 = vmatpush1.msra.mxu0 0.0
    %1195 = vmatprep.subr.mxu0 0.0
    %1196 = vmatpush1.msra.mxu0 0.0
    %1197 = vmatprep.subr.mxu0 0.0
    %1198 = vmatpush1.msra.mxu0 0.0
    %1199 = vmatprep.subr.mxu0 0.0
    %1200 = vmatpush1.msra.mxu0 0.0
    %1201 = vmatprep.subr.mxu0 0.0
    %1202 = vmatpush1.msra.mxu0 0.0
    %1203 = vmatprep.subr.mxu0 0.0
    %1204 = vmatpush1.msra.mxu0 0.0
    %1205 = vmatprep.subr.mxu0 0.0
    %1206 = vmatpush1.msra.mxu0 0.0
    %1207 = vmatprep.subr.mxu0 0.0
    %1208 = vmatpush1.msra.mxu0 0.0
    %1209 = vmatprep.subr.mxu0 0.0
    %1210 = vmatpush1.msra.mxu0 0.0
    %1211 = vmatprep.subr.mxu0 0.0
    %1212 = vmatpush1.msra.mxu0 0.0
    %1213 = vmatprep.subr.mxu0 0.0
    %1214 = vmatpush1.msra.mxu0 0.0
    %1215 = vmatprep.subr.mxu0 0.0
    %1216 = vmatpush1.msra.mxu0 0.0
    %1217 = vmatprep.subr.mxu0 0.0
    %1218 = vmatpush1.msra.mxu0 0.0
    %1219 = vmatprep.mubr.f32.mxu0 0.0
    %1220 = vmatmul.mubr.f32.gmra.mrb[0].mxu0 %v1144
    %v1221 = vpop.f32.mrb[0].mxu0
    %v1222 = vadd.f32 0.0, %v1221
    %v1223 = vpop.f32.mrb[0].mxu0
    %1224 = vmatprep.mubr.f32.mxu0 0.0
    %1225 = vmatmul.mubr.f32.gmra.mrb[0].mxu0 %v1147
    %v1226 = vpop.f32.mrb[0].mxu0
    %v1227 = vadd.f32 0.0, %v1226
    %v1228 = vpop.f32.mrb[0].mxu0
    %1229 = vmatprep.mubr.f32.mxu0 0.0
    %1230 = vmatmul.mubr.f32.gmra.mrb[0].mxu0 %v1150
    %v1231 = vpop.f32.mrb[0].mxu0
    %v1232 = vadd.f32 0.0, %v1231
    %v1233 = vpop.f32.mrb[0].mxu0
    %1234 = vmatprep.mubr.f32.mxu0 0.0
    %1235 = vmatmul.mubr.f32.gmra.mrb[0].mxu0 %v1153
    %v1236 = vpop.f32.mrb[0].mxu0
    %v1237 = vadd.f32 0.0, %v1236
    %v1238 = vpop.f32.mrb[0].mxu0
    %1239 = vdwg.mxu0
    %1242 = vrot.lane.b32.xlu0 %v1232, 16
    %v1243 = vpop.permute.xlu0 %1242
    %1244 = vrot.lane.b32.xlu0 %v1237, 16
    %v1245 = vpop.permute.xlu0 %1244
    %v1248 = vsel %vm215, %v1222, %v1243
    %v1249 = vsel %vm215, %v1227, %v1245
    %s1250 = scalar_lea.vmem %s6, 32
    %v1251 = vld [vmem:[%s1250] sm:$0xff]
    %v1252 = vld [vmem:[%s1250 + $0x8] sm:$0xff]
    %v1253 = vld [vmem:[%s1250 + $0x10] sm:$0xff]
    %v1254 = vld [vmem:[%s1250 + $0x18] sm:$0xff]
    %v1256 = vsel %vm65, %v1248, 0
    %v1259 = vsel %vm65, %v1249, 0
    %1261 = vmatprep.subr.mxu0 0.0
    %1262 = vmatpush1.msra.mxu0 %v1251
    %1263 = vmatprep.subr.mxu0 0.0
    %1264 = vmatpush1.msra.mxu0 %v1252
    %1265 = vmatprep.subr.mxu0 0.0
    %1266 = vmatpush1.msra.mxu0 %v1253
    %1267 = vmatprep.subr.mxu0 0.0
    %1268 = vmatpush1.msra.mxu0 %v1254
    %1269 = vmatprep.subr.mxu0 0.0
    %1270 = vmatpush1.msra.mxu0 0.0
    %1271 = vmatprep.subr.mxu0 0.0
    %1272 = vmatpush1.msra.mxu0 0.0
    %1273 = vmatprep.subr.mxu0 0.0
    %1274 = vmatpush1.msra.mxu0 0.0
    %1275 = vmatprep.subr.mxu0 0.0
    %1276 = vmatpush1.msra.mxu0 0.0
    %1277 = vmatprep.subr.mxu0 0.0
    %1278 = vmatpush1.msra.mxu0 0.0
    %1279 = vmatprep.subr.mxu0 0.0
    %1280 = vmatpush1.msra.mxu0 0.0
    %1281 = vmatprep.subr.mxu0 0.0
    %1282 = vmatpush1.msra.mxu0 0.0
    %1283 = vmatprep.subr.mxu0 0.0
    %1284 = vmatpush1.msra.mxu0 0.0
    %1285 = vmatprep.subr.mxu0 0.0
    %1286 = vmatpush1.msra.mxu0 0.0
    %1287 = vmatprep.subr.mxu0 0.0
    %1288 = vmatpush1.msra.mxu0 0.0
    %1289 = vmatprep.subr.mxu0 0.0
    %1290 = vmatpush1.msra.mxu0 0.0
    %1291 = vmatprep.subr.mxu0 0.0
    %1292 = vmatpush1.msra.mxu0 0.0
    %1293 = vmatprep.subr.mxu0 0.0
    %1294 = vmatpush1.msra.mxu0 0.0
    %1295 = vmatprep.subr.mxu0 0.0
    %1296 = vmatpush1.msra.mxu0 0.0
    %1297 = vmatprep.subr.mxu0 0.0
    %1298 = vmatpush1.msra.mxu0 0.0
    %1299 = vmatprep.subr.mxu0 0.0
    %1300 = vmatpush1.msra.mxu0 0.0
    %1301 = vmatprep.subr.mxu0 0.0
    %1302 = vmatpush1.msra.mxu0 0.0
    %1303 = vmatprep.subr.mxu0 0.0
    %1304 = vmatpush1.msra.mxu0 0.0
    %1305 = vmatprep.subr.mxu0 0.0
    %1306 = vmatpush1.msra.mxu0 0.0
    %1307 = vmatprep.subr.mxu0 0.0
    %1308 = vmatpush1.msra.mxu0 0.0
    %1309 = vmatprep.subr.mxu0 0.0
    %1310 = vmatpush1.msra.mxu0 0.0
    %1311 = vmatprep.subr.mxu0 0.0
    %1312 = vmatpush1.msra.mxu0 0.0
    %1313 = vmatprep.subr.mxu0 0.0
    %1314 = vmatpush1.msra.mxu0 0.0
    %1315 = vmatprep.subr.mxu0 0.0
    %1316 = vmatpush1.msra.mxu0 0.0
    %1317 = vmatprep.subr.mxu0 0.0
    %1318 = vmatpush1.msra.mxu0 0.0
    %1319 = vmatprep.subr.mxu0 0.0
    %1320 = vmatpush1.msra.mxu0 0.0
    %1321 = vmatprep.subr.mxu0 0.0
    %1322 = vmatpush1.msra.mxu0 0.0
    %1323 = vmatprep.subr.mxu0 0.0
    %1324 = vmatpush1.msra.mxu0 0.0
    %1325 = vmatprep.mubr.f32.mxu0 0.0
    %1326 = vmatmul.mubr.f32.gmra.mrb[0].mxu0 %v1256
    %v1327 = vpop.f32.mrb[0].mxu0
    %v1328 = vadd.f32 0.0, %v1327
    %v1329 = vpop.f32.mrb[0].mxu0
    %1330 = vmatprep.mubr.f32.mxu0 0.0
    %1331 = vmatmul.mubr.f32.gmra.mrb[0].mxu0 %v1259
    %v1332 = vpop.f32.mrb[0].mxu0
    %v1333 = vadd.f32 0.0, %v1332
    %v1334 = vpop.f32.mrb[0].mxu0
    %1335 = vdwg.mxu0
    %v1336 = vadd.f32 %v830, %v1328
    %v1337 = vadd.f32 %v831, %v1333
    %s1338 = scalar_lea.vmem %s7, 1
    %v1339 = vld [vmem:[%s1338] sm:$0x1]
    %v1341 = vlaneseq
    %v1342 = vshrl.u32 %v1341, 7
    %v1343 = vsub.s32 0, %v1342
    %v1344 = vrot.slane %v1339, %v1343
    %v1346 = vadd.f32 %v1336, %v1344
    %v1347 = vadd.f32 %v1337, %v1344
    %s1348 = scalar_lea.vmem %s8, 1
    %v1349 = vld [vmem:[%s1348] sm:$0x1]
    %s1350 = scalar_lea.vmem %s9, 1
    %v1351 = vld [vmem:[%s1350] sm:$0x1]
    %v1352 = vsel %vm65, %v1346, 0.0
    %1353 = vadd.xlane.f32.xlu0 %v1352
    %v1354 = vpop.xlane.xlu0 %1353
    %v1355 = vsel %vm65, %v1347, 0.0
    %1356 = vadd.xlane.f32.xlu0 %v1355
    %v1357 = vpop.xlane.xlu0 %1356
    %v1358 = vmul.f32 %v1354, %v72
    %v1359 = vmul.f32 %v1357, %v72
    %v1360 = vsub.f32 %v1346, %v1358
    %v1361 = vsub.f32 %v1347, %v1359
    %v1362 = vmul.f32 %v1360, %v1360
    %v1363 = vmul.f32 %v1361, %v1361
    %v1364 = vsel %vm65, %v1362, 0.0
    %1365 = vadd.xlane.f32.xlu0 %v1364
    %v1366 = vpop.xlane.xlu0 %1365
    %v1367 = vsel %vm65, %v1363, 0.0
    %1368 = vadd.xlane.f32.xlu0 %v1367
    %v1369 = vpop.xlane.xlu0 %1368
    %v1370 = vmul.f32 %v1366, %v72
    %v1371 = vmul.f32 %v1369, %v72
    %v1372 = vadd.f32 %v1370, 1e-05
    %v1373 = vadd.f32 %v1371, 1e-05
    %v1374 = vrsqrt.pop %v1372
    %v1375 = vrsqrt.pop %v1373
    %v1376 = vmul.f32 %v1360, %v1374
    %v1377 = vmul.f32 %v1361, %v1375
    %v1379 = vlaneseq
    %v1380 = vshrl.u32 %v1379, 7
    %v1381 = vsub.s32 0, %v1380
    %v1382 = vrot.slane %v1349, %v1381
    %v1384 = vmul.f32 %v1376, %v1382
    %v1385 = vmul.f32 %v1377, %v1382
    %v1387 = vlaneseq
    %v1388 = vshrl.u32 %v1387, 7
    %v1389 = vsub.s32 0, %v1388
    %v1390 = vrot.slane %v1351, %v1389
    %v1392 = vadd.f32 %v1384, %v1390
    %v1393 = vadd.f32 %v1385, %v1390
    %s1394 = scalar_lea.vmem %s10, 32
    %v1395 = vld [vmem:[%s1394] sm:$0xff]
    %v1396 = vld [vmem:[%s1394 + $0x8] sm:$0xff]
    %v1397 = vld [vmem:[%s1394 + $0x10] sm:$0xff]
    %v1398 = vld [vmem:[%s1394 + $0x18] sm:$0xff]
    %s1399 = scalar_lea.vmem %s11, 1
    %v1400 = vld [vmem:[%s1399] sm:$0x1]
    %v1402 = vlaneseq
    %v1403 = vshrl.u32 %v1402, 7
    %v1404 = vsub.s32 0, %v1403
    %v1405 = vrot.slane %v1400, %v1404
    %v1408 = vsel %vm65, %v1392, 0
    %v1411 = vsel %vm65, %v1393, 0
    %1413 = vmatprep.subr.mxu0 0.0
    %1414 = vmatpush1.msra.mxu0 %v1395
    %1415 = vmatprep.subr.mxu0 0.0
    %1416 = vmatpush1.msra.mxu0 %v1396
    %1417 = vmatprep.subr.mxu0 0.0
    %1418 = vmatpush1.msra.mxu0 %v1397
    %1419 = vmatprep.subr.mxu0 0.0
    %1420 = vmatpush1.msra.mxu0 %v1398
    %1421 = vmatprep.subr.mxu0 0.0
    %1422 = vmatpush1.msra.mxu0 0.0
    %1423 = vmatprep.subr.mxu0 0.0
    %1424 = vmatpush1.msra.mxu0 0.0
    %1425 = vmatprep.subr.mxu0 0.0
    %1426 = vmatpush1.msra.mxu0 0.0
    %1427 = vmatprep.subr.mxu0 0.0
    %1428 = vmatpush1.msra.mxu0 0.0
    %1429 = vmatprep.subr.mxu0 0.0
    %1430 = vmatpush1.msra.mxu0 0.0
    %1431 = vmatprep.subr.mxu0 0.0
    %1432 = vmatpush1.msra.mxu0 0.0
    %1433 = vmatprep.subr.mxu0 0.0
    %1434 = vmatpush1.msra.mxu0 0.0
    %1435 = vmatprep.subr.mxu0 0.0
    %1436 = vmatpush1.msra.mxu0 0.0
    %1437 = vmatprep.subr.mxu0 0.0
    %1438 = vmatpush1.msra.mxu0 0.0
    %1439 = vmatprep.subr.mxu0 0.0
    %1440 = vmatpush1.msra.mxu0 0.0
    %1441 = vmatprep.subr.mxu0 0.0
    %1442 = vmatpush1.msra.mxu0 0.0
    %1443 = vmatprep.subr.mxu0 0.0
    %1444 = vmatpush1.msra.mxu0 0.0
    %1445 = vmatprep.subr.mxu0 0.0
    %1446 = vmatpush1.msra.mxu0 0.0
    %1447 = vmatprep.subr.mxu0 0.0
    %1448 = vmatpush1.msra.mxu0 0.0
    %1449 = vmatprep.subr.mxu0 0.0
    %1450 = vmatpush1.msra.mxu0 0.0
    %1451 = vmatprep.subr.mxu0 0.0
    %1452 = vmatpush1.msra.mxu0 0.0
    %1453 = vmatprep.subr.mxu0 0.0
    %1454 = vmatpush1.msra.mxu0 0.0
    %1455 = vmatprep.subr.mxu0 0.0
    %1456 = vmatpush1.msra.mxu0 0.0
    %1457 = vmatprep.subr.mxu0 0.0
    %1458 = vmatpush1.msra.mxu0 0.0
    %1459 = vmatprep.subr.mxu0 0.0
    %1460 = vmatpush1.msra.mxu0 0.0
    %1461 = vmatprep.subr.mxu0 0.0
    %1462 = vmatpush1.msra.mxu0 0.0
    %1463 = vmatprep.subr.mxu0 0.0
    %1464 = vmatpush1.msra.mxu0 0.0
    %1465 = vmatprep.subr.mxu0 0.0
    %1466 = vmatpush1.msra.mxu0 0.0
    %1467 = vmatprep.subr.mxu0 0.0
    %1468 = vmatpush1.msra.mxu0 0.0
    %1469 = vmatprep.subr.mxu0 0.0
    %1470 = vmatpush1.msra.mxu0 0.0
    %1471 = vmatprep.subr.mxu0 0.0
    %1472 = vmatpush1.msra.mxu0 0.0
    %1473 = vmatprep.subr.mxu0 0.0
    %1474 = vmatpush1.msra.mxu0 0.0
    %1475 = vmatprep.subr.mxu0 0.0
    %1476 = vmatpush1.msra.mxu0 0.0
    %1477 = vmatprep.mubr.f32.mxu0 0.0
    %1478 = vmatmul.mubr.f32.gmra.mrb[0].mxu0 %v1408
    %v1479 = vpop.f32.mrb[0].mxu0
    %v1480 = vadd.f32 %v1405, %v1479
    %v1481 = vpop.f32.mrb[0].mxu0
    %1482 = vmatprep.mubr.f32.mxu0 0.0
    %1483 = vmatmul.mubr.f32.gmra.mrb[0].mxu0 %v1411
    %v1484 = vpop.f32.mrb[0].mxu0
    %v1485 = vadd.f32 %v1405, %v1484
    %v1486 = vpop.f32.mrb[0].mxu0
    %1487 = vdwg.mxu0
    %v1488 = vmul.f32 %v1480, 0.5
    %v1489 = vmul.f32 %v1485, 0.5
    %v1490 = vmul.f32 %v1480, 0.044715
    %v1491 = vmul.f32 %v1485, 0.044715
    %v1492 = vmul.f32 %v1490, %v1480
    %v1493 = vmul.f32 %v1491, %v1485
    %v1494 = vmul.f32 %v1492, %v1480
    %v1495 = vmul.f32 %v1493, %v1485
    %v1496 = vadd.f32 %v1480, %v1494
    %v1497 = vadd.f32 %v1485, %v1495
    %v1498 = vmul.f32 %v1496, 0.7978846
    %v1499 = vmul.f32 %v1497, 0.7978846
    %v1500 = vtanh.pop %v1498
    %v1501 = vtanh.pop %v1499
    %v1502 = vadd.f32 %v1500, 1.0
    %v1503 = vadd.f32 %v1501, 1.0
    %v1504 = vmul.f32 %v1488, %v1502
    %v1505 = vmul.f32 %v1489, %v1503
    %s1506 = scalar_lea.vmem %s12, 128
    %v1507 = vld [vmem:[%s1506] sm:$0xff]
    %v1508 = vld [vmem:[%s1506 + $0x8] sm:$0xff]
    %v1509 = vld [vmem:[%s1506 + $0x10] sm:$0xff]
    %v1510 = vld [vmem:[%s1506 + $0x18] sm:$0xff]
    %v1511 = vld [vmem:[%s1506 + $0x20] sm:$0xff]
    %v1512 = vld [vmem:[%s1506 + $0x28] sm:$0xff]
    %v1513 = vld [vmem:[%s1506 + $0x30] sm:$0xff]
    %v1514 = vld [vmem:[%s1506 + $0x38] sm:$0xff]
    %v1515 = vld [vmem:[%s1506 + $0x40] sm:$0xff]
    %v1516 = vld [vmem:[%s1506 + $0x48] sm:$0xff]
    %v1517 = vld [vmem:[%s1506 + $0x50] sm:$0xff]
    %v1518 = vld [vmem:[%s1506 + $0x58] sm:$0xff]
    %v1519 = vld [vmem:[%s1506 + $0x60] sm:$0xff]
    %v1520 = vld [vmem:[%s1506 + $0x68] sm:$0xff]
    %v1521 = vld [vmem:[%s1506 + $0x70] sm:$0xff]
    %v1522 = vld [vmem:[%s1506 + $0x78] sm:$0xff]
    %1523 = vmatprep.subr.mxu0 0.0
    %1524 = vmatpush1.msra.mxu0 %v1507
    %1525 = vmatprep.subr.mxu0 0.0
    %1526 = vmatpush1.msra.mxu0 %v1508
    %1527 = vmatprep.subr.mxu0 0.0
    %1528 = vmatpush1.msra.mxu0 %v1509
    %1529 = vmatprep.subr.mxu0 0.0
    %1530 = vmatpush1.msra.mxu0 %v1510
    %1531 = vmatprep.subr.mxu0 0.0
    %1532 = vmatpush1.msra.mxu0 %v1511
    %1533 = vmatprep.subr.mxu0 0.0
    %1534 = vmatpush1.msra.mxu0 %v1512
    %1535 = vmatprep.subr.mxu0 0.0
    %1536 = vmatpush1.msra.mxu0 %v1513
    %1537 = vmatprep.subr.mxu0 0.0
    %1538 = vmatpush1.msra.mxu0 %v1514
    %1539 = vmatprep.subr.mxu0 0.0
    %1540 = vmatpush1.msra.mxu0 %v1515
    %1541 = vmatprep.subr.mxu0 0.0
    %1542 = vmatpush1.msra.mxu0 %v1516
    %1543 = vmatprep.subr.mxu0 0.0
    %1544 = vmatpush1.msra.mxu0 %v1517
    %1545 = vmatprep.subr.mxu0 0.0
    %1546 = vmatpush1.msra.mxu0 %v1518
    %1547 = vmatprep.subr.mxu0 0.0
    %1548 = vmatpush1.msra.mxu0 %v1519
    %1549 = vmatprep.subr.mxu0 0.0
    %1550 = vmatpush1.msra.mxu0 %v1520
    %1551 = vmatprep.subr.mxu0 0.0
    %1552 = vmatpush1.msra.mxu0 %v1521
    %1553 = vmatprep.subr.mxu0 0.0
    %1554 = vmatpush1.msra.mxu0 %v1522
    %1555 = vmatprep.subr.mxu0 0.0
    %1556 = vmatpush1.msra.mxu0 0.0
    %1557 = vmatprep.subr.mxu0 0.0
    %1558 = vmatpush1.msra.mxu0 0.0
    %1559 = vmatprep.subr.mxu0 0.0
    %1560 = vmatpush1.msra.mxu0 0.0
    %1561 = vmatprep.subr.mxu0 0.0
    %1562 = vmatpush1.msra.mxu0 0.0
    %1563 = vmatprep.subr.mxu0 0.0
    %1564 = vmatpush1.msra.mxu0 0.0
    %1565 = vmatprep.subr.mxu0 0.0
    %1566 = vmatpush1.msra.mxu0 0.0
    %1567 = vmatprep.subr.mxu0 0.0
    %1568 = vmatpush1.msra.mxu0 0.0
    %1569 = vmatprep.subr.mxu0 0.0
    %1570 = vmatpush1.msra.mxu0 0.0
    %1571 = vmatprep.subr.mxu0 0.0
    %1572 = vmatpush1.msra.mxu0 0.0
    %1573 = vmatprep.subr.mxu0 0.0
    %1574 = vmatpush1.msra.mxu0 0.0
    %1575 = vmatprep.subr.mxu0 0.0
    %1576 = vmatpush1.msra.mxu0 0.0
    %1577 = vmatprep.subr.mxu0 0.0
    %1578 = vmatpush1.msra.mxu0 0.0
    %1579 = vmatprep.subr.mxu0 0.0
    %1580 = vmatpush1.msra.mxu0 0.0
    %1581 = vmatprep.subr.mxu0 0.0
    %1582 = vmatpush1.msra.mxu0 0.0
    %1583 = vmatprep.subr.mxu0 0.0
    %1584 = vmatpush1.msra.mxu0 0.0
    %1585 = vmatprep.subr.mxu0 0.0
    %1586 = vmatpush1.msra.mxu0 0.0
    %1587 = vmatprep.mubr.f32.mxu0 0.0
    %1588 = vmatmul.mubr.f32.gmra.mrb[0].mxu0 %v1504
    %v1589 = vpop.f32.mrb[0].mxu0
    %v1590 = vadd.f32 0.0, %v1589
    %v1591 = vpop.f32.mrb[0].mxu0
    %1592 = vmatprep.mubr.f32.mxu0 0.0
    %1593 = vmatmul.mubr.f32.gmra.mrb[0].mxu0 %v1505
    %v1594 = vpop.f32.mrb[0].mxu0
    %v1595 = vadd.f32 0.0, %v1594
    %v1596 = vpop.f32.mrb[0].mxu0
    %1597 = vdwg.mxu0
    %v1598 = vadd.f32 %v1346, %v1590
    %v1599 = vadd.f32 %v1347, %v1595
    %s1600 = scalar_lea.vmem %s13, 1
    %v1601 = vld [vmem:[%s1600] sm:$0x1]
    %v1603 = vlaneseq
    %v1604 = vshrl.u32 %v1603, 7
    %v1605 = vsub.s32 0, %v1604
    %v1606 = vrot.slane %v1601, %v1605
    %v1608 = vadd.f32 %v1598, %v1606
    %v1609 = vadd.f32 %v1599, %v1606
    %v1610 = vld [vmem:[%s14] sm:$0x1]
    %v1611 = vld [vmem:[%s15] sm:$0x1]
    %v1612 = vsel %vm65, %v1608, 0.0
    %1613 = vadd.xlane.f32.xlu0 %v1612
    %v1614 = vpop.xlane.xlu0 %1613
    %v1615 = vsel %vm65, %v1609, 0.0
    %1616 = vadd.xlane.f32.xlu0 %v1615
    %v1617 = vpop.xlane.xlu0 %1616
    %v1618 = vmul.f32 %v1614, %v72
    %v1619 = vmul.f32 %v1617, %v72
    %v1620 = vsub.f32 %v1608, %v1618
    %v1621 = vsub.f32 %v1609, %v1619
    %v1622 = vmul.f32 %v1620, %v1620
    %v1623 = vmul.f32 %v1621, %v1621
    %v1624 = vsel %vm65, %v1622, 0.0
    %1625 = vadd.xlane.f32.xlu0 %v1624
    %v1626 = vpop.xlane.xlu0 %1625
    %v1627 = vsel %vm65, %v1623, 0.0
    %1628 = vadd.xlane.f32.xlu0 %v1627
    %v1629 = vpop.xlane.xlu0 %1628
    %v1630 = vmul.f32 %v1626, %v72
    %v1631 = vmul.f32 %v1629, %v72
    %v1632 = vadd.f32 %v1630, 1e-05
    %v1633 = vadd.f32 %v1631, 1e-05
    %v1634 = vrsqrt.pop %v1632
    %v1635 = vrsqrt.pop %v1633
    %v1636 = vmul.f32 %v1620, %v1634
    %v1637 = vmul.f32 %v1621, %v1635
    %v1639 = vlaneseq
    %v1640 = vshrl.u32 %v1639, 7
    %v1641 = vsub.s32 0, %v1640
    %v1642 = vrot.slane %v1610, %v1641
    %v1644 = vmul.f32 %v1636, %v1642
    %v1645 = vmul.f32 %v1637, %v1642
    %v1647 = vlaneseq
    %v1648 = vshrl.u32 %v1647, 7
    %v1649 = vsub.s32 0, %v1648
    %v1650 = vrot.slane %v1611, %v1649
    %v1652 = vadd.f32 %v1644, %v1650
    %v1653 = vadd.f32 %v1645, %v1650
    %v1654 = vld [vmem:[%s16] sm:$0xff]
    %v1655 = vld [vmem:[%s16 + $0x8] sm:$0xff]
    %v1656 = vld [vmem:[%s16 + $0x10] sm:$0xff]
    %v1657 = vld [vmem:[%s16 + $0x18] sm:$0xff]
    %v1659 = vsel %vm65, %v1652, 0
    %v1662 = vsel %vm65, %v1653, 0
    %1664 = vmatprep.subr.mxu0 0.0
    %1665 = vmatpush1.msra.mxu0 %v1654
    %1666 = vmatprep.subr.mxu0 0.0
    %1667 = vmatpush1.msra.mxu0 %v1655
    %1668 = vmatprep.subr.mxu0 0.0
    %1669 = vmatpush1.msra.mxu0 %v1656
    %1670 = vmatprep.subr.mxu0 0.0
    %1671 = vmatpush1.msra.mxu0 %v1657
    %1672 = vmatprep.subr.mxu0 0.0
    %1673 = vmatpush1.msra.mxu0 0.0
    %1674 = vmatprep.subr.mxu0 0.0
    %1675 = vmatpush1.msra.mxu0 0.0
    %1676 = vmatprep.subr.mxu0 0.0
    %1677 = vmatpush1.msra.mxu0 0.0
    %1678 = vmatprep.subr.mxu0 0.0
    %1679 = vmatpush1.msra.mxu0 0.0
    %1680 = vmatprep.subr.mxu0 0.0
    %1681 = vmatpush1.msra.mxu0 0.0
    %1682 = vmatprep.subr.mxu0 0.0
    %1683 = vmatpush1.msra.mxu0 0.0
    %1684 = vmatprep.subr.mxu0 0.0
    %1685 = vmatpush1.msra.mxu0 0.0
    %1686 = vmatprep.subr.mxu0 0.0
    %1687 = vmatpush1.msra.mxu0 0.0
    %1688 = vmatprep.subr.mxu0 0.0
    %1689 = vmatpush1.msra.mxu0 0.0
    %1690 = vmatprep.subr.mxu0 0.0
    %1691 = vmatpush1.msra.mxu0 0.0
    %1692 = vmatprep.subr.mxu0 0.0
    %1693 = vmatpush1.msra.mxu0 0.0
    %1694 = vmatprep.subr.mxu0 0.0
    %1695 = vmatpush1.msra.mxu0 0.0
    %1696 = vmatprep.subr.mxu0 0.0
    %1697 = vmatpush1.msra.mxu0 0.0
    %1698 = vmatprep.subr.mxu0 0.0
    %1699 = vmatpush1.msra.mxu0 0.0
    %1700 = vmatprep.subr.mxu0 0.0
    %1701 = vmatpush1.msra.mxu0 0.0
    %1702 = vmatprep.subr.mxu0 0.0
    %1703 = vmatpush1.msra.mxu0 0.0
    %1704 = vmatprep.subr.mxu0 0.0
    %1705 = vmatpush1.msra.mxu0 0.0
    %1706 = vmatprep.subr.mxu0 0.0
    %1707 = vmatpush1.msra.mxu0 0.0
    %1708 = vmatprep.subr.mxu0 0.0
    %1709 = vmatpush1.msra.mxu0 0.0
    %1710 = vmatprep.subr.mxu0 0.0
    %1711 = vmatpush1.msra.mxu0 0.0
    %1712 = vmatprep.subr.mxu0 0.0
    %1713 = vmatpush1.msra.mxu0 0.0
    %1714 = vmatprep.subr.mxu0 0.0
    %1715 = vmatpush1.msra.mxu0 0.0
    %1716 = vmatprep.subr.mxu0 0.0
    %1717 = vmatpush1.msra.mxu0 0.0
    %1718 = vmatprep.subr.mxu0 0.0
    %1719 = vmatpush1.msra.mxu0 0.0
    %1720 = vmatprep.subr.mxu0 0.0
    %1721 = vmatpush1.msra.mxu0 0.0
    %1722 = vmatprep.subr.mxu0 0.0
    %1723 = vmatpush1.msra.mxu0 0.0
    %1724 = vmatprep.subr.mxu0 0.0
    %1725 = vmatpush1.msra.mxu0 0.0
    %1726 = vmatprep.subr.mxu0 0.0
    %1727 = vmatpush1.msra.mxu0 0.0
    %1728 = vmatprep.mubr.f32.mxu0 0.0
    %1729 = vmatmul.mubr.f32.gmra.mrb[0].mxu0 %v1659
    %v1730 = vpop.f32.mrb[0].mxu0
    %v1731 = vadd.f32 0.0, %v1730
    %v1732 = vpop.f32.mrb[0].mxu0
    %1733 = vmatprep.mubr.f32.mxu0 0.0
    %1734 = vmatmul.mubr.f32.gmra.mrb[0].mxu0 %v1662
    %v1735 = vpop.f32.mrb[0].mxu0
    %v1736 = vadd.f32 0.0, %v1735
    %v1737 = vpop.f32.mrb[0].mxu0
    %1738 = vdwg.mxu0
    %1739 = vst [vmem:[#allocation2] sm:$0xff] %v1731
    %1740 = vst [vmem:[#allocation2 + $0x8] sm:$0xff] %v1736
    // Predicated region
    $region70: #{transformer_forward.1} parent=1 // pred_check
      _
    $region71: #{transformer_forward.1} parent=1 // pred_check_branch
      %1742 = sbr.rel (0) target = $region73
    $region72: #{transformer_forward.1} parent=1 // pred_region
      %s1744 = ssub.s32 256, 256
      %1745 = vsyncadd [#allocation3], %s1744
      %s1746 = sshll.u32 [#allocation2], 4
      %s1747 = int_to_ptr.vmem [resolvable:$true] %s1746
      %1752 = dma.vmem_to_hbm [thread:$0]  %s1747, 256, %s17, [#allocation3], 128, 128, 8
    $region73: #{transformer_forward.1} parent=1 // pred_fallthru
      _
    // Predicated region
    $region74: #{transformer_forward.1} parent=1 // pred_check
      _
    $region75: #{transformer_forward.1} parent=1 // pred_check_branch
      %1754 = sbr.rel (0) target = $region77
    $region76: #{transformer_forward.1} parent=1 // pred_region
      %1755 = dma.done [#allocation3], 256
    $region77: #{transformer_forward.1} parent=1 // pred_fallthru
      _
    %1756 = vsyncpa [#allocation3], 1

</llo_original>
